<compile_context>
chip_gen: v6e
topology: v6e:2x2x1
jax: 0.10.0
libtpu: 0.0.40
codegen_flags: <defaults>
</compile_context>

<pallas_src>
import functools

import jax
import jax.numpy as jnp
from jax import lax
from jax.experimental import pallas as pl
from jax.experimental.pallas import tpu as pltpu

BN_EPS = 1e-5          # torch.nn.BatchNorm1d default
NORM_EPS = 1e-12       # torch.nn.functional.normalize default
BIG = 1e30             # "+/-inf" stand-in for masked f32 scores
CAND = 128             # lane-dense width of running top-k candidate scratch
PACK_OFFSET = 8.0      # dot_q in [-1,1]  ->  dot_q + 8*match unpacks per-lane


def _spec(shape):
    nd = len(shape)
    return pl.BlockSpec(shape, lambda i, _nd=nd: (0,) * _nd)


# ----------------------------- in-kernel helpers -----------------------------

def _mlp_block(x, w1, b1, g, be, w2, b2):
    # get_mlp: Linear -> BatchNorm1d (training-mode batch stats) -> ReLU -> Linear
    h = jnp.dot(x, w1, preferred_element_type=jnp.float32) + b1
    mu = jnp.mean(h, axis=0, keepdims=True)
    # one-pass variance, clamped against f32 cancellation going negative
    var = jnp.maximum(jnp.mean(h * h, axis=0, keepdims=True) - mu * mu, 0.0)
    hn = (h - mu) * lax.rsqrt(var + BN_EPS) * g + be
    hr = jnp.maximum(hn, 0.0)
    return jnp.dot(hr, w2, preferred_element_type=jnp.float32) + b2


def _l2n(x):
    # F.normalize(x, dim=1): x / max(||x||, eps)  ==  x * rsqrt(max(ss, eps^2))
    ss = jnp.sum(x * x, axis=1, keepdims=True)
    return x * lax.rsqrt(jnp.maximum(ss, NORM_EPS * NORM_EPS))


# ----------------------------- Pallas kernels -----------------------------

def _branches_kernel(xq_ref, xt_ref,
                     qwb_ref, qbb_ref,
                     qf_w1, qf_b1, qf_g, qf_be, qf_w2, qf_b2,
                     pw1, pb1, pg, pbe, pw2, pb2,
                     twb_ref, tbb_ref,
                     tf_w1, tf_b1, tf_g, tf_be, tf_w2, tf_b2,
                     q_out_ref, t_out_ref):
    # Both encoder branches in ONE launch (they are independent grid=(1,) work).
    # TODO(synk): real module uses a full ResNet backbone; stand-in = GAP + Linear.
    # TODO(synk): scaling guard -- at ResNet dims (feat=2048, hidden=4096) cast the
    #             MLP weights to bf16 and/or tile the hidden dim with a grid; the
    #             f32 weights alone would blow the 32 MiB scoped / 64 MiB v7x VMEM.

    # ---- query branch: GAP -> Linear -> fc MLP -> predict_q MLP -> L2 norm ----
    pooled_q = jnp.sum(xq_ref[...], axis=2)               # 1/(H*W) folded into qwb
    feat_q = jnp.dot(pooled_q, qwb_ref[...],
                     preferred_element_type=jnp.float32) + qbb_ref[...]
    zq = _mlp_block(feat_q, qf_w1[...], qf_b1[...], qf_g[...], qf_be[...],
                    qf_w2[...], qf_b2[...])
    q = _mlp_block(zq, pw1[...], pb1[...], pg[...], pbe[...], pw2[...], pb2[...])
    q_out_ref[...] = _l2n(q).astype(q_out_ref.dtype)       # bf16 out (cast hoisted
                                                            # out of the nn_loss K loop)

    # ---- target branch (no grad): GAP -> Linear -> fc MLP -> L2 norm ----
    pooled_t = jnp.sum(xt_ref[...], axis=2)
    feat_t = jnp.dot(pooled_t, twb_ref[...],
                     preferred_element_type=jnp.float32) + tbb_ref[...]
    zt = _mlp_block(feat_t, tf_w1[...], tf_b1[...], tf_g[...], tf_be[...],
                    tf_w2[...], tf_b2[...])
    t_out_ref[...] = _l2n(zt).astype(t_out_ref.dtype)


def _nn_loss_kernel(tq_ref, queue_ref, qlab_ref, lab_ref, out_ref,
                    vs_sc, vqm_sc, *, topk, batch):
    # grid = (K/TK,) only: the full batch lives in one resident tile, so the bank
    # is streamed from HBM exactly once.  Running top-k carried across K steps.
    k = pl.program_id(0)
    nk = pl.num_programs(0)

    @pl.when(k == 0)
    def _():
        vs_sc[...] = jnp.full_like(vs_sc, -BIG)      # max-selection on raw dot scores
        vqm_sc[...] = jnp.zeros_like(vqm_sc)

    # ONE stacked matmul: rows [0:B] = target features, rows [B:2B] = query features.
    # LHS/bank are bf16, f32-accumulated on the MXU; bank is already (C,TK) so no
    # transpose, and its RHS is pushed to the MXU once per tile instead of twice.
    scores = jnp.dot(tq_ref[...], queue_ref[...],
                     preferred_element_type=jnp.float32)        # (2B, TK)
    s_t = scores[:batch, :]                                     # (B, TK)
    s_q = scores[batch:, :]                                     # (B, TK)

    # label match hoisted out of the top-k loop; pack dot_q and match into ONE
    # carried value (f32 throughout -- v5e VPU has no bf16 path).
    match = (qlab_ref[...] == lab_ref[...]).astype(jnp.float32)  # (B, TK)
    s_qm = s_q + PACK_OFFSET * match

    b, tk = s_t.shape
    work_s = jnp.concatenate([vs_sc[...], s_t], axis=1)          # (B, CAND+TK)
    work_qm = jnp.concatenate([vqm_sc[...], s_qm], axis=1)
    w = CAND + tk
    col = lax.broadcasted_iota(jnp.int32, (b, w), 1)
    ccol = lax.broadcasted_iota(jnp.int32, (b, CAND), 1)

    new_s = jnp.full((b, CAND), -BIG, jnp.float32)
    new_qm = jnp.zeros((b, CAND), jnp.float32)
    masked = work_s
    for j in range(topk):                      # static unroll, topk is tiny
        mrow = jnp.max(masked, axis=1, keepdims=True)
        idx = jnp.min(jnp.where(masked >= mrow, col, w), axis=1, keepdims=True)
        onehot = col == idx                    # exactly one lane (first max)
        qm_sel = jnp.sum(jnp.where(onehot, work_qm, 0.0), axis=1, keepdims=True)
        slot = ccol == j
        new_s = jnp.where(slot, mrow, new_s)
        new_qm = jnp.where(slot, qm_sel, new_qm)
        masked = jnp.where(onehot, -BIG, masked)
    vs_sc[...] = new_s
    vqm_sc[...] = new_qm

    @pl.when(k == nk - 1)
    def _():
        # unpack once at finalize (lanes >= topk hold 0 -> contribute nothing)
        m_sel = (new_qm > 0.5 * PACK_OFFSET).astype(jnp.float32)
        q_sel = new_qm - PACK_OFFSET * m_sel
        qsum = jnp.sum(q_sel, axis=1, keepdims=True)   # sum of selected dot_q
        msum = jnp.sum(m_sel, axis=1, keepdims=True)   # sum of matches
        # single lane-dense output block: lane 0 = qsum, lane 1 = msum
        out_ref[...] = jnp.where(ccol == 0, qsum, jnp.where(ccol == 1, msum, 0.0))


# ----------------------------- wrappers (glue) -----------------------------

def momentum_update(params_t, params_q, m):
    # pure mem-bound elementwise EMA: plain XLA fuses this fine (no Pallas launches)
    return jax.tree_util.tree_map(lambda t, q: t * m + q * (1.0 - m),
                                  params_t, params_q)


def encoders_forward(im_q, im_t_shuffled, enc_q, pred_q, enc_t, inv_hw):
    B, Cin, H, W = im_q.shape
    xq = im_q.reshape(B, Cin, H * W)
    xt = im_t_shuffled.reshape(B, Cin, H * W)
    qb, qf = enc_q["backbone"], enc_q["fc"]
    tb, tf = enc_t["backbone"], enc_t["fc"]
    P = qf["w2"].shape[1]
    args = (xq, xt,
            qb["wb"] * inv_hw, qb["bb"],            # fold GAP's 1/(H*W) into weight
            qf["w1"], qf["b1"], qf["gamma"], qf["beta"], qf["w2"], qf["b2"],
            pred_q["w1"], pred_q["b1"], pred_q["gamma"], pred_q["beta"],
            pred_q["w2"], pred_q["b2"],
            tb["wb"] * inv_hw, tb["bb"],
            tf["w1"], tf["b1"], tf["gamma"], tf["beta"], tf["w2"], tf["b2"])
    return pl.pallas_call(
        _branches_kernel, grid=(1,),
        in_specs=[_spec(a.shape) for a in args],
        out_specs=(_spec((B, P)), _spec((B, P))),
        out_shape=(jax.ShapeDtypeStruct((B, P), jnp.bfloat16),
                   jax.ShapeDtypeStruct((B, P), jnp.bfloat16)),
    )(*args)


def nn_loss(tq_stacked, queue_t, queue_labels, labels, topk):
    # tq_stacked: (2B, C) bf16 -- rows [0:B] target features, [B:2B] query features.
    twoB, C = tq_stacked.shape
    B = twoB // 2
    K = queue_t.shape[1]
    assert topk <= CAND, "running top-k scratch is CAND lanes wide"
    assert B % 8 == 0, "aligned sublane split of the stacked (2B,TK) score tile"
    # K-tile: bank DMA (C,TK) double-buffers behind the matmul + merge.  TK<=1024
    # keeps 2*C*TK*2 (bank) + 2B*TK*4 (scores) + 2*B*(CAND+TK)*4 (merge) well under
    # the explicit scoped-VMEM limit on every generation incl. v7x (64 MiB phys).
    TK = K if K <= 1024 else 1024
    assert K % TK == 0
    qlab = queue_labels.reshape(1, K).astype(jnp.int32)
    lab = labels.reshape(B, 1).astype(jnp.int32)
    out = pl.pallas_call(
        functools.partial(_nn_loss_kernel, topk=topk, batch=B),
        grid=(K // TK,),
        in_specs=[
            # stacked LHS: constant block index -> fetched once, stays resident
            pl.BlockSpec((twoB, C), lambda k: (0, 0)),
            # bank tile (C, TK): MXU-direct, double-buffered behind compute
            pl.BlockSpec((C, TK), lambda k: (0, k)),
            pl.BlockSpec((1, TK), lambda k: (0, k)),
            pl.BlockSpec((B, 1), lambda k: (0, 0)),
        ],
        out_specs=pl.BlockSpec((B, CAND), lambda k: (0, 0)),
        out_shape=jax.ShapeDtypeStruct((B, CAND), jnp.float32),
        scratch_shapes=[pltpu.VMEM((B, CAND), jnp.float32)] * 2,
        compiler_params=pltpu.CompilerParams(
            # K axis carries the running top-k -> arbitrary.  No batch/core split:
            # the kernel is bank-stream (HBM) bound, so splitting the batch over
            # v7x's 2 TCs would only double total bank reads.
            dimension_semantics=("arbitrary",),
            vmem_limit_bytes=32 * 1024 * 1024),
    )(tq_stacked, queue_t, qlab, lab)
    qsum = out[:, 0]                    # sum over topk of (query . nn) dot products
    msum = out[:, 1]                    # sum over topk of label matches
    # dist_q = 2 - 2*dot  ->  (nn_dist_q.sum(1) / topk).mean()
    loss = 2.0 - 2.0 * jnp.mean(qsum) / topk
    purity = jnp.mean(msum) / topk
    return loss, purity


# ----------------------------- model init / forward -----------------------------

def init_mlp(key, din, hidden, dout):
    k1, k2 = jax.random.split(key)
    return {
        "w1": 0.05 * jax.random.normal(k1, (din, hidden), jnp.float32),
        "b1": jnp.zeros((1, hidden), jnp.float32),
        "gamma": jnp.ones((1, hidden), jnp.float32),
        "beta": jnp.zeros((1, hidden), jnp.float32),
        "w2": 0.05 * jax.random.normal(k2, (hidden, dout), jnp.float32),
        "b2": jnp.zeros((1, dout), jnp.float32),
    }


def init_meanshift(key, in_ch, feat_dim, mem_bank_size, m=0.99, topk=5):
    hidden = feat_dim * 2
    proj = feat_dim // 4
    kb, kfc, kpred, kq = jax.random.split(key, 4)
    encoder_q = {
        "backbone": {"wb": 0.1 * jax.random.normal(kb, (in_ch, feat_dim), jnp.float32),
                     "bb": jnp.zeros((1, feat_dim), jnp.float32)},
        "fc": init_mlp(kfc, feat_dim, hidden, proj),
    }
    # param_t.data.copy_(param_q.data)
    encoder_t = jax.tree_util.tree_map(lambda a: a, encoder_q)
    predict_q = init_mlp(kpred, proj, hidden, proj)
    q0 = jax.random.normal(kq, (mem_bank_size, proj), jnp.float32)
    q0 = q0 * lax.rsqrt(jnp.maximum(jnp.sum(q0 * q0, axis=1, keepdims=True),
                                    NORM_EPS * NORM_EPS))
    return {
        "m": m, "topk": topk,
        "encoder_q": encoder_q, "encoder_t": encoder_t, "predict_q": predict_q,
        # bank stored transposed (proj, K) in bf16: MXU-direct, half the HBM traffic
        "queue": q0.T.astype(jnp.bfloat16),
        "labels": jnp.full((mem_bank_size,), -1, jnp.int32),
        "queue_ptr": jnp.array(0, jnp.int32),
    }


def meanshift_forward(state, im_q, im_t, labels, shuffle_key):
    m, topk = state["m"], state["topk"]
    enc_q, pred_q = state["encoder_q"], state["predict_q"]
    B, Cin, H, W = im_q.shape
    inv_hw = 1.0 / float(H * W)

    # ---- momentum update of target encoder (plain XLA) ----
    enc_t = momentum_update(state["encoder_t"], enc_q, m)

    # ---- ShuffleBN permutation in glue ----
    fwd_inds = jax.random.permutation(shuffle_key, im_t.shape[0])
    bwd_inds = jnp.argsort(fwd_inds)

    # ---- ONE fused kernel for both encoder branches (bf16, L2-normalized out) ----
    query, cur_t_shuf = encoders_forward(im_q, im_t[fwd_inds], enc_q, pred_q,
                                         enc_t, inv_hw)
    cur_t = lax.stop_gradient(cur_t_shuf[bwd_inds])

    # ---- dequeue & enqueue (buffer state update in glue; bank is (proj, K) bf16) ----
    ptr = state["queue_ptr"]
    queue_t = lax.dynamic_update_slice(state["queue"],
                                       cur_t.T.astype(state["queue"].dtype),
                                       (jnp.int32(0), ptr))
    labels_buf = lax.dynamic_update_slice(state["labels"],
                                          labels.astype(jnp.int32), (ptr,))
    new_ptr = ((ptr + im_t.shape[0]) % state["queue"].shape[1]).astype(jnp.int32)

    # ---- stacked bf16 LHS: one matmul per bank tile in the nn_loss kernel ----
    tq = jnp.concatenate([cur_t, query], axis=0)           # (2B, proj) bf16

    # ---- fused, K-tiled distance / top-k / gather / loss kernel ----
    loss, purity = nn_loss(tq, queue_t, labels_buf, labels, topk)

    new_state = dict(state, encoder_t=enc_t, queue=queue_t,
                     labels=labels_buf, queue_ptr=new_ptr)
    return (loss, purity), new_state


# ----------------------------- driver -----------------------------

if __name__ == "__main__":
    key = jax.random.PRNGKey(0)
    k_imq, k_imt, k_lab, k_shuf, k_par = jax.random.split(key, 5)

    B, Cin, H, W = 8, 3, 16, 16
    feat_dim = 32                      # -> hidden=64, proj_dim=8
    mem_bank_size = 128                # mem_bank_size % B == 0
    topk = 5

    im_q = jax.random.normal(k_imq, (B, Cin, H, W), jnp.float32)
    im_t = jax.random.normal(k_imt, (B, Cin, H, W), jnp.float32)
    labels = jax.random.randint(k_lab, (B,), 0, 10, jnp.int32)

    state = init_meanshift(k_par, Cin, feat_dim, mem_bank_size, m=0.99, topk=topk)
    (loss, purity), new_state = meanshift_forward(state, im_q, im_t, labels, k_shuf)

    jax.block_until_ready((loss, purity))
    print("KERNEL_OK")
</pallas_src>

<mosaic_0001>
module attributes {stable_mosaic.version = 11 : i64} {
  func.func @_branches_kernel(%arg0: i32, %arg1: memref<8x3x256xf32, #tpu.memory_space<vmem>>, %arg2: memref<8x3x256xf32, #tpu.memory_space<vmem>>, %arg3: memref<3x32xf32, #tpu.memory_space<vmem>>, %arg4: memref<1x32xf32, #tpu.memory_space<vmem>>, %arg5: memref<32x64xf32, #tpu.memory_space<vmem>>, %arg6: memref<1x64xf32, #tpu.memory_space<vmem>>, %arg7: memref<1x64xf32, #tpu.memory_space<vmem>>, %arg8: memref<1x64xf32, #tpu.memory_space<vmem>>, %arg9: memref<64x8xf32, #tpu.memory_space<vmem>>, %arg10: memref<1x8xf32, #tpu.memory_space<vmem>>, %arg11: memref<8x64xf32, #tpu.memory_space<vmem>>, %arg12: memref<1x64xf32, #tpu.memory_space<vmem>>, %arg13: memref<1x64xf32, #tpu.memory_space<vmem>>, %arg14: memref<1x64xf32, #tpu.memory_space<vmem>>, %arg15: memref<64x8xf32, #tpu.memory_space<vmem>>, %arg16: memref<1x8xf32, #tpu.memory_space<vmem>>, %arg17: memref<3x32xf32, #tpu.memory_space<vmem>>, %arg18: memref<1x32xf32, #tpu.memory_space<vmem>>, %arg19: memref<32x64xf32, #tpu.memory_space<vmem>>, %arg20: memref<1x64xf32, #tpu.memory_space<vmem>>, %arg21: memref<1x64xf32, #tpu.memory_space<vmem>>, %arg22: memref<1x64xf32, #tpu.memory_space<vmem>>, %arg23: memref<64x8xf32, #tpu.memory_space<vmem>>, %arg24: memref<1x8xf32, #tpu.memory_space<vmem>>, %arg25: memref<8x8xbf16, #tpu.memory_space<vmem>>, %arg26: memref<8x8xbf16, #tpu.memory_space<vmem>>) attributes {dimension_semantics = [#tpu.dimension_semantics<arbitrary>], iteration_bounds = array<i64: 1>, scalar_prefetch = 0 : i64, scratch_operands = 0 : i64, tpu.core_type = #tpu.core_type<tc>, window_params = [{pipeline_mode = #tpu.pipeline_mode<synchronous>, transform_indices = @transform_0, window_bounds = array<i64: 8, 3, 256>}, {pipeline_mode = #tpu.pipeline_mode<synchronous>, transform_indices = @transform_1, window_bounds = array<i64: 8, 3, 256>}, {pipeline_mode = #tpu.pipeline_mode<synchronous>, transform_indices = @transform_2, window_bounds = array<i64: 3, 32>}, {pipeline_mode = #tpu.pipeline_mode<synchronous>, transform_indices = @transform_3, window_bounds = array<i64: 1, 32>}, {pipeline_mode = #tpu.pipeline_mode<synchronous>, transform_indices = @transform_4, window_bounds = array<i64: 32, 64>}, {pipeline_mode = #tpu.pipeline_mode<synchronous>, transform_indices = @transform_5, window_bounds = array<i64: 1, 64>}, {pipeline_mode = #tpu.pipeline_mode<synchronous>, transform_indices = @transform_6, window_bounds = array<i64: 1, 64>}, {pipeline_mode = #tpu.pipeline_mode<synchronous>, transform_indices = @transform_7, window_bounds = array<i64: 1, 64>}, {pipeline_mode = #tpu.pipeline_mode<synchronous>, transform_indices = @transform_8, window_bounds = array<i64: 64, 8>}, {pipeline_mode = #tpu.pipeline_mode<synchronous>, transform_indices = @transform_9, window_bounds = array<i64: 1, 8>}, {pipeline_mode = #tpu.pipeline_mode<synchronous>, transform_indices = @transform_10, window_bounds = array<i64: 8, 64>}, {pipeline_mode = #tpu.pipeline_mode<synchronous>, transform_indices = @transform_11, window_bounds = array<i64: 1, 64>}, {pipeline_mode = #tpu.pipeline_mode<synchronous>, transform_indices = @transform_12, window_bounds = array<i64: 1, 64>}, {pipeline_mode = #tpu.pipeline_mode<synchronous>, transform_indices = @transform_13, window_bounds = array<i64: 1, 64>}, {pipeline_mode = #tpu.pipeline_mode<synchronous>, transform_indices = @transform_14, window_bounds = array<i64: 64, 8>}, {pipeline_mode = #tpu.pipeline_mode<synchronous>, transform_indices = @transform_15, window_bounds = array<i64: 1, 8>}, {pipeline_mode = #tpu.pipeline_mode<synchronous>, transform_indices = @transform_16, window_bounds = array<i64: 3, 32>}, {pipeline_mode = #tpu.pipeline_mode<synchronous>, transform_indices = @transform_17, window_bounds = array<i64: 1, 32>}, {pipeline_mode = #tpu.pipeline_mode<synchronous>, transform_indices = @transform_18, window_bounds = array<i64: 32, 64>}, {pipeline_mode = #tpu.pipeline_mode<synchronous>, transform_indices = @transform_19, window_bounds = array<i64: 1, 64>}, {pipeline_mode = #tpu.pipeline_mode<synchronous>, transform_indices = @transform_20, window_bounds = array<i64: 1, 64>}, {pipeline_mode = #tpu.pipeline_mode<synchronous>, transform_indices = @transform_21, window_bounds = array<i64: 1, 64>}, {pipeline_mode = #tpu.pipeline_mode<synchronous>, transform_indices = @transform_22, window_bounds = array<i64: 64, 8>}, {pipeline_mode = #tpu.pipeline_mode<synchronous>, transform_indices = @transform_23, window_bounds = array<i64: 1, 8>}, {pipeline_mode = #tpu.pipeline_mode<synchronous>, transform_indices = @transform_24, window_bounds = array<i64: 8, 8>}, {pipeline_mode = #tpu.pipeline_mode<synchronous>, transform_indices = @transform_25, window_bounds = array<i64: 8, 8>}]} {
    %c0 = arith.constant 0 : index
    %c0_0 = arith.constant 0 : index
    %c0_1 = arith.constant 0 : index
    %0 = vector.load %arg1[%c0, %c0_0, %c0_1] : memref<8x3x256xf32, #tpu.memory_space<vmem>>, vector<8x3x256xf32>
    %cst = arith.constant dense<0.000000e+00> : vector<8x3xf32>
    %1 = vector.multi_reduction <add>, %0, %cst [2] : vector<8x3x256xf32> to vector<8x3xf32>
    %c0_2 = arith.constant 0 : index
    %c0_3 = arith.constant 0 : index
    %2 = vector.load %arg3[%c0_2, %c0_3] : memref<3x32xf32, #tpu.memory_space<vmem>>, vector<3x32xf32>
    %cst_4 = arith.constant dense<0.000000e+00> : vector<8x32xf32>
    %3 = tpu.matmul %1, %2, %cst_4 {dimension_numbers = #tpu.dot_dimension_numbers<[1], [0], [0], [1], [0, 0, 1, 1], [], []>} : vector<8x3xf32>, vector<3x32xf32>, vector<8x32xf32> -> vector<8x32xf32>
    %c0_5 = arith.constant 0 : index
    %c0_6 = arith.constant 0 : index
    %4 = vector.load %arg4[%c0_5, %c0_6] : memref<1x32xf32, #tpu.memory_space<vmem>>, vector<1x32xf32>
    %5 = vector.broadcast %4 : vector<1x32xf32> to vector<8x32xf32>
    %6 = arith.addf %3, %5 : vector<8x32xf32>
    %c0_7 = arith.constant 0 : index
    %c0_8 = arith.constant 0 : index
    %7 = vector.load %arg5[%c0_7, %c0_8] : memref<32x64xf32, #tpu.memory_space<vmem>>, vector<32x64xf32>
    %c0_9 = arith.constant 0 : index
    %c0_10 = arith.constant 0 : index
    %8 = vector.load %arg6[%c0_9, %c0_10] : memref<1x64xf32, #tpu.memory_space<vmem>>, vector<1x64xf32>
    %c0_11 = arith.constant 0 : index
    %c0_12 = arith.constant 0 : index
    %9 = vector.load %arg7[%c0_11, %c0_12] : memref<1x64xf32, #tpu.memory_space<vmem>>, vector<1x64xf32>
    %c0_13 = arith.constant 0 : index
    %c0_14 = arith.constant 0 : index
    %10 = vector.load %arg8[%c0_13, %c0_14] : memref<1x64xf32, #tpu.memory_space<vmem>>, vector<1x64xf32>
    %c0_15 = arith.constant 0 : index
    %c0_16 = arith.constant 0 : index
    %11 = vector.load %arg9[%c0_15, %c0_16] : memref<64x8xf32, #tpu.memory_space<vmem>>, vector<64x8xf32>
    %c0_17 = arith.constant 0 : index
    %c0_18 = arith.constant 0 : index
    %12 = vector.load %arg10[%c0_17, %c0_18] : memref<1x8xf32, #tpu.memory_space<vmem>>, vector<1x8xf32>
    %cst_19 = arith.constant dense<0.000000e+00> : vector<8x64xf32>
    %13 = tpu.matmul %6, %7, %cst_19 {dimension_numbers = #tpu.dot_dimension_numbers<[1], [0], [0], [1], [0, 0, 1, 1], [], []>} : vector<8x32xf32>, vector<32x64xf32>, vector<8x64xf32> -> vector<8x64xf32>
    %14 = vector.broadcast %8 : vector<1x64xf32> to vector<8x64xf32>
    %15 = arith.addf %13, %14 : vector<8x64xf32>
    %cst_20 = arith.constant dense<0.000000e+00> : vector<64xf32>
    %16 = vector.multi_reduction <add>, %15, %cst_20 [0] : vector<8x64xf32> to vector<64xf32>
    %17 = vector.shape_cast %16 : vector<64xf32> to vector<1x64xf32>
    %cst_21 = arith.constant 8.000000e+00 : f32
    %18 = vector.broadcast %cst_21 : f32 to vector<1x64xf32>
    %19 = arith.divf %17, %18 : vector<1x64xf32>
    %20 = arith.mulf %15, %15 : vector<8x64xf32>
    %cst_22 = arith.constant dense<0.000000e+00> : vector<64xf32>
    %21 = vector.multi_reduction <add>, %20, %cst_22 [0] : vector<8x64xf32> to vector<64xf32>
    %22 = vector.shape_cast %21 : vector<64xf32> to vector<1x64xf32>
    %cst_23 = arith.constant 8.000000e+00 : f32
    %23 = vector.broadcast %cst_23 : f32 to vector<1x64xf32>
    %24 = arith.divf %22, %23 : vector<1x64xf32>
    %25 = arith.mulf %19, %19 : vector<1x64xf32>
    %26 = arith.subf %24, %25 : vector<1x64xf32>
    %cst_24 = arith.constant 0.000000e+00 : f32
    %27 = vector.broadcast %cst_24 : f32 to vector<1x64xf32>
    %28 = arith.maximumf %26, %27 : vector<1x64xf32>
    %29 = vector.broadcast %19 : vector<1x64xf32> to vector<8x64xf32>
    %30 = arith.subf %15, %29 : vector<8x64xf32>
    %cst_25 = arith.constant 9.99999974E-6 : f32
    %31 = vector.broadcast %cst_25 : f32 to vector<1x64xf32>
    %32 = arith.addf %28, %31 : vector<1x64xf32>
    %33 = math.rsqrt %32 : vector<1x64xf32>
    %34 = vector.broadcast %33 : vector<1x64xf32> to vector<8x64xf32>
    %35 = arith.mulf %30, %34 : vector<8x64xf32>
    %36 = vector.broadcast %9 : vector<1x64xf32> to vector<8x64xf32>
    %37 = arith.mulf %35, %36 : vector<8x64xf32>
    %38 = vector.broadcast %10 : vector<1x64xf32> to vector<8x64xf32>
    %39 = arith.addf %37, %38 : vector<8x64xf32>
    %cst_26 = arith.constant 0.000000e+00 : f32
    %40 = vector.broadcast %cst_26 : f32 to vector<8x64xf32>
    %41 = arith.maximumf %39, %40 : vector<8x64xf32>
    %cst_27 = arith.constant dense<0.000000e+00> : vector<8x8xf32>
    %42 = tpu.matmul %41, %11, %cst_27 {dimension_numbers = #tpu.dot_dimension_numbers<[1], [0], [0], [1], [0, 0, 1, 1], [], []>} : vector<8x64xf32>, vector<64x8xf32>, vector<8x8xf32> -> vector<8x8xf32>
    %43 = vector.broadcast %12 : vector<1x8xf32> to vector<8x8xf32>
    %44 = arith.addf %42, %43 : vector<8x8xf32>
    %c0_28 = arith.constant 0 : index
    %c0_29 = arith.constant 0 : index
    %45 = vector.load %arg11[%c0_28, %c0_29] : memref<8x64xf32, #tpu.memory_space<vmem>>, vector<8x64xf32>
    %c0_30 = arith.constant 0 : index
    %c0_31 = arith.constant 0 : index
    %46 = vector.load %arg12[%c0_30, %c0_31] : memref<1x64xf32, #tpu.memory_space<vmem>>, vector<1x64xf32>
    %c0_32 = arith.constant 0 : index
    %c0_33 = arith.constant 0 : index
    %47 = vector.load %arg13[%c0_32, %c0_33] : memref<1x64xf32, #tpu.memory_space<vmem>>, vector<1x64xf32>
    %c0_34 = arith.constant 0 : index
    %c0_35 = arith.constant 0 : index
    %48 = vector.load %arg14[%c0_34, %c0_35] : memref<1x64xf32, #tpu.memory_space<vmem>>, vector<1x64xf32>
    %c0_36 = arith.constant 0 : index
    %c0_37 = arith.constant 0 : index
    %49 = vector.load %arg15[%c0_36, %c0_37] : memref<64x8xf32, #tpu.memory_space<vmem>>, vector<64x8xf32>
    %c0_38 = arith.constant 0 : index
    %c0_39 = arith.constant 0 : index
    %50 = vector.load %arg16[%c0_38, %c0_39] : memref<1x8xf32, #tpu.memory_space<vmem>>, vector<1x8xf32>
    %cst_40 = arith.constant dense<0.000000e+00> : vector<8x64xf32>
    %51 = tpu.matmul %44, %45, %cst_40 {dimension_numbers = #tpu.dot_dimension_numbers<[1], [0], [0], [1], [0, 0, 1, 1], [], []>} : vector<8x8xf32>, vector<8x64xf32>, vector<8x64xf32> -> vector<8x64xf32>
    %52 = vector.broadcast %46 : vector<1x64xf32> to vector<8x64xf32>
    %53 = arith.addf %51, %52 : vector<8x64xf32>
    %cst_41 = arith.constant dense<0.000000e+00> : vector<64xf32>
    %54 = vector.multi_reduction <add>, %53, %cst_41 [0] : vector<8x64xf32> to vector<64xf32>
    %55 = vector.shape_cast %54 : vector<64xf32> to vector<1x64xf32>
    %cst_42 = arith.constant 8.000000e+00 : f32
    %56 = vector.broadcast %cst_42 : f32 to vector<1x64xf32>
    %57 = arith.divf %55, %56 : vector<1x64xf32>
    %58 = arith.mulf %53, %53 : vector<8x64xf32>
    %cst_43 = arith.constant dense<0.000000e+00> : vector<64xf32>
    %59 = vector.multi_reduction <add>, %58, %cst_43 [0] : vector<8x64xf32> to vector<64xf32>
    %60 = vector.shape_cast %59 : vector<64xf32> to vector<1x64xf32>
    %cst_44 = arith.constant 8.000000e+00 : f32
    %61 = vector.broadcast %cst_44 : f32 to vector<1x64xf32>
    %62 = arith.divf %60, %61 : vector<1x64xf32>
    %63 = arith.mulf %57, %57 : vector<1x64xf32>
    %64 = arith.subf %62, %63 : vector<1x64xf32>
    %cst_45 = arith.constant 0.000000e+00 : f32
    %65 = vector.broadcast %cst_45 : f32 to vector<1x64xf32>
    %66 = arith.maximumf %64, %65 : vector<1x64xf32>
    %67 = vector.broadcast %57 : vector<1x64xf32> to vector<8x64xf32>
    %68 = arith.subf %53, %67 : vector<8x64xf32>
    %cst_46 = arith.constant 9.99999974E-6 : f32
    %69 = vector.broadcast %cst_46 : f32 to vector<1x64xf32>
    %70 = arith.addf %66, %69 : vector<1x64xf32>
    %71 = math.rsqrt %70 : vector<1x64xf32>
    %72 = vector.broadcast %71 : vector<1x64xf32> to vector<8x64xf32>
    %73 = arith.mulf %68, %72 : vector<8x64xf32>
    %74 = vector.broadcast %47 : vector<1x64xf32> to vector<8x64xf32>
    %75 = arith.mulf %73, %74 : vector<8x64xf32>
    %76 = vector.broadcast %48 : vector<1x64xf32> to vector<8x64xf32>
    %77 = arith.addf %75, %76 : vector<8x64xf32>
    %cst_47 = arith.constant 0.000000e+00 : f32
    %78 = vector.broadcast %cst_47 : f32 to vector<8x64xf32>
    %79 = arith.maximumf %77, %78 : vector<8x64xf32>
    %cst_48 = arith.constant dense<0.000000e+00> : vector<8x8xf32>
    %80 = tpu.matmul %79, %49, %cst_48 {dimension_numbers = #tpu.dot_dimension_numbers<[1], [0], [0], [1], [0, 0, 1, 1], [], []>} : vector<8x64xf32>, vector<64x8xf32>, vector<8x8xf32> -> vector<8x8xf32>
    %81 = vector.broadcast %50 : vector<1x8xf32> to vector<8x8xf32>
    %82 = arith.addf %80, %81 : vector<8x8xf32>
    %83 = arith.mulf %82, %82 : vector<8x8xf32>
    %cst_49 = arith.constant dense<0.000000e+00> : vector<8xf32>
    %84 = vector.multi_reduction <add>, %83, %cst_49 [1] : vector<8x8xf32> to vector<8xf32>
    %85 = vector.shape_cast %84 : vector<8xf32> to vector<8x1xf32>
    %cst_50 = arith.constant 1.000000e-24 : f32
    %86 = vector.broadcast %cst_50 : f32 to vector<8x1xf32>
    %87 = arith.maximumf %85, %86 : vector<8x1xf32>
    %88 = math.rsqrt %87 : vector<8x1xf32>
    %89 = vector.broadcast %88 : vector<8x1xf32> to vector<8x8xf32>
    %90 = arith.mulf %82, %89 : vector<8x8xf32>
    %91 = arith.truncf %90 : vector<8x8xf32> to vector<8x8xbf16>
    %c0_51 = arith.constant 0 : index
    %c0_52 = arith.constant 0 : index
    %92 = vector.load %arg25[%c0_51, %c0_52] : memref<8x8xbf16, #tpu.memory_space<vmem>>, vector<8x8xbf16>
    tpu.vector_store %arg25[%c0_51, %c0_52], %91 {strides = array<i32>} : memref<8x8xbf16, #tpu.memory_space<vmem>>, vector<8x8xbf16>,
    %c0_53 = arith.constant 0 : index
    %c0_54 = arith.constant 0 : index
    %c0_55 = arith.constant 0 : index
    %93 = vector.load %arg2[%c0_53, %c0_54, %c0_55] : memref<8x3x256xf32, #tpu.memory_space<vmem>>, vector<8x3x256xf32>
    %cst_56 = arith.constant dense<0.000000e+00> : vector<8x3xf32>
    %94 = vector.multi_reduction <add>, %93, %cst_56 [2] : vector<8x3x256xf32> to vector<8x3xf32>
    %c0_57 = arith.constant 0 : index
    %c0_58 = arith.constant 0 : index
    %95 = vector.load %arg17[%c0_57, %c0_58] : memref<3x32xf32, #tpu.memory_space<vmem>>, vector<3x32xf32>
    %cst_59 = arith.constant dense<0.000000e+00> : vector<8x32xf32>
    %96 = tpu.matmul %94, %95, %cst_59 {dimension_numbers = #tpu.dot_dimension_numbers<[1], [0], [0], [1], [0, 0, 1, 1], [], []>} : vector<8x3xf32>, vector<3x32xf32>, vector<8x32xf32> -> vector<8x32xf32>
    %c0_60 = arith.constant 0 : index
    %c0_61 = arith.constant 0 : index
    %97 = vector.load %arg18[%c0_60, %c0_61] : memref<1x32xf32, #tpu.memory_space<vmem>>, vector<1x32xf32>
    %98 = vector.broadcast %97 : vector<1x32xf32> to vector<8x32xf32>
    %99 = arith.addf %96, %98 : vector<8x32xf32>
    %c0_62 = arith.constant 0 : index
    %c0_63 = arith.constant 0 : index
    %100 = vector.load %arg19[%c0_62, %c0_63] : memref<32x64xf32, #tpu.memory_space<vmem>>, vector<32x64xf32>
    %c0_64 = arith.constant 0 : index
    %c0_65 = arith.constant 0 : index
    %101 = vector.load %arg20[%c0_64, %c0_65] : memref<1x64xf32, #tpu.memory_space<vmem>>, vector<1x64xf32>
    %c0_66 = arith.constant 0 : index
    %c0_67 = arith.constant 0 : index
    %102 = vector.load %arg21[%c0_66, %c0_67] : memref<1x64xf32, #tpu.memory_space<vmem>>, vector<1x64xf32>
    %c0_68 = arith.constant 0 : index
    %c0_69 = arith.constant 0 : index
    %103 = vector.load %arg22[%c0_68, %c0_69] : memref<1x64xf32, #tpu.memory_space<vmem>>, vector<1x64xf32>
    %c0_70 = arith.constant 0 : index
    %c0_71 = arith.constant 0 : index
    %104 = vector.load %arg23[%c0_70, %c0_71] : memref<64x8xf32, #tpu.memory_space<vmem>>, vector<64x8xf32>
    %c0_72 = arith.constant 0 : index
    %c0_73 = arith.constant 0 : index
    %105 = vector.load %arg24[%c0_72, %c0_73] : memref<1x8xf32, #tpu.memory_space<vmem>>, vector<1x8xf32>
    %cst_74 = arith.constant dense<0.000000e+00> : vector<8x64xf32>
    %106 = tpu.matmul %99, %100, %cst_74 {dimension_numbers = #tpu.dot_dimension_numbers<[1], [0], [0], [1], [0, 0, 1, 1], [], []>} : vector<8x32xf32>, vector<32x64xf32>, vector<8x64xf32> -> vector<8x64xf32>
    %107 = vector.broadcast %101 : vector<1x64xf32> to vector<8x64xf32>
    %108 = arith.addf %106, %107 : vector<8x64xf32>
    %cst_75 = arith.constant dense<0.000000e+00> : vector<64xf32>
    %109 = vector.multi_reduction <add>, %108, %cst_75 [0] : vector<8x64xf32> to vector<64xf32>
    %110 = vector.shape_cast %109 : vector<64xf32> to vector<1x64xf32>
    %cst_76 = arith.constant 8.000000e+00 : f32
    %111 = vector.broadcast %cst_76 : f32 to vector<1x64xf32>
    %112 = arith.divf %110, %111 : vector<1x64xf32>
    %113 = arith.mulf %108, %108 : vector<8x64xf32>
    %cst_77 = arith.constant dense<0.000000e+00> : vector<64xf32>
    %114 = vector.multi_reduction <add>, %113, %cst_77 [0] : vector<8x64xf32> to vector<64xf32>
    %115 = vector.shape_cast %114 : vector<64xf32> to vector<1x64xf32>
    %cst_78 = arith.constant 8.000000e+00 : f32
    %116 = vector.broadcast %cst_78 : f32 to vector<1x64xf32>
    %117 = arith.divf %115, %116 : vector<1x64xf32>
    %118 = arith.mulf %112, %112 : vector<1x64xf32>
    %119 = arith.subf %117, %118 : vector<1x64xf32>
    %cst_79 = arith.constant 0.000000e+00 : f32
    %120 = vector.broadcast %cst_79 : f32 to vector<1x64xf32>
    %121 = arith.maximumf %119, %120 : vector<1x64xf32>
    %122 = vector.broadcast %112 : vector<1x64xf32> to vector<8x64xf32>
    %123 = arith.subf %108, %122 : vector<8x64xf32>
    %cst_80 = arith.constant 9.99999974E-6 : f32
    %124 = vector.broadcast %cst_80 : f32 to vector<1x64xf32>
    %125 = arith.addf %121, %124 : vector<1x64xf32>
    %126 = math.rsqrt %125 : vector<1x64xf32>
    %127 = vector.broadcast %126 : vector<1x64xf32> to vector<8x64xf32>
    %128 = arith.mulf %123, %127 : vector<8x64xf32>
    %129 = vector.broadcast %102 : vector<1x64xf32> to vector<8x64xf32>
    %130 = arith.mulf %128, %129 : vector<8x64xf32>
    %131 = vector.broadcast %103 : vector<1x64xf32> to vector<8x64xf32>
    %132 = arith.addf %130, %131 : vector<8x64xf32>
    %cst_81 = arith.constant 0.000000e+00 : f32
    %133 = vector.broadcast %cst_81 : f32 to vector<8x64xf32>
    %134 = arith.maximumf %132, %133 : vector<8x64xf32>
    %cst_82 = arith.constant dense<0.000000e+00> : vector<8x8xf32>
    %135 = tpu.matmul %134, %104, %cst_82 {dimension_numbers = #tpu.dot_dimension_numbers<[1], [0], [0], [1], [0, 0, 1, 1], [], []>} : vector<8x64xf32>, vector<64x8xf32>, vector<8x8xf32> -> vector<8x8xf32>
    %136 = vector.broadcast %105 : vector<1x8xf32> to vector<8x8xf32>
    %137 = arith.addf %135, %136 : vector<8x8xf32>
    %138 = arith.mulf %137, %137 : vector<8x8xf32>
    %cst_83 = arith.constant dense<0.000000e+00> : vector<8xf32>
    %139 = vector.multi_reduction <add>, %138, %cst_83 [1] : vector<8x8xf32> to vector<8xf32>
    %140 = vector.shape_cast %139 : vector<8xf32> to vector<8x1xf32>
    %cst_84 = arith.constant 1.000000e-24 : f32
    %141 = vector.broadcast %cst_84 : f32 to vector<8x1xf32>
    %142 = arith.maximumf %140, %141 : vector<8x1xf32>
    %143 = math.rsqrt %142 : vector<8x1xf32>
    %144 = vector.broadcast %143 : vector<8x1xf32> to vector<8x8xf32>
    %145 = arith.mulf %137, %144 : vector<8x8xf32>
    %146 = arith.truncf %145 : vector<8x8xf32> to vector<8x8xbf16>
    %c0_85 = arith.constant 0 : index
    %c0_86 = arith.constant 0 : index
    %147 = vector.load %arg26[%c0_85, %c0_86] : memref<8x8xbf16, #tpu.memory_space<vmem>>, vector<8x8xbf16>
    tpu.vector_store %arg26[%c0_85, %c0_86], %146 {strides = array<i32>} : memref<8x8xbf16, #tpu.memory_space<vmem>>, vector<8x8xbf16>,
    return
  }
  func.func @transform_0(%arg0: i32) -> (i32, i32, i32) {
    %c0_i32 = arith.constant 0 : i32
    %c0_i32_0 = arith.constant 0 : i32
    %c0_i32_1 = arith.constant 0 : i32
    %c0_i32_2 = arith.constant 0 : i32
    return %c0_i32, %c0_i32_0, %c0_i32_1 : i32, i32, i32
  }
  func.func @transform_1(%arg0: i32) -> (i32, i32, i32) {
    %c0_i32 = arith.constant 0 : i32
    %c0_i32_0 = arith.constant 0 : i32
    %c0_i32_1 = arith.constant 0 : i32
    %c0_i32_2 = arith.constant 0 : i32
    return %c0_i32, %c0_i32_0, %c0_i32_1 : i32, i32, i32
  }
  func.func @transform_2(%arg0: i32) -> (i32, i32) {
    %c0_i32 = arith.constant 0 : i32
    %c0_i32_0 = arith.constant 0 : i32
    %c0_i32_1 = arith.constant 0 : i32
    return %c0_i32, %c0_i32_0 : i32, i32
  }
  func.func @transform_3(%arg0: i32) -> (i32, i32) {
    %c0_i32 = arith.constant 0 : i32
    %c0_i32_0 = arith.constant 0 : i32
    %c0_i32_1 = arith.constant 0 : i32
    return %c0_i32, %c0_i32_0 : i32, i32
  }
  func.func @transform_4(%arg0: i32) -> (i32, i32) {
    %c0_i32 = arith.constant 0 : i32
    %c0_i32_0 = arith.constant 0 : i32
    %c0_i32_1 = arith.constant 0 : i32
    return %c0_i32, %c0_i32_0 : i32, i32
  }
  func.func @transform_5(%arg0: i32) -> (i32, i32) {
    %c0_i32 = arith.constant 0 : i32
    %c0_i32_0 = arith.constant 0 : i32
    %c0_i32_1 = arith.constant 0 : i32
    return %c0_i32, %c0_i32_0 : i32, i32
  }
  func.func @transform_6(%arg0: i32) -> (i32, i32) {
    %c0_i32 = arith.constant 0 : i32
    %c0_i32_0 = arith.constant 0 : i32
    %c0_i32_1 = arith.constant 0 : i32
    return %c0_i32, %c0_i32_0 : i32, i32
  }
  func.func @transform_7(%arg0: i32) -> (i32, i32) {
    %c0_i32 = arith.constant 0 : i32
    %c0_i32_0 = arith.constant 0 : i32
    %c0_i32_1 = arith.constant 0 : i32
    return %c0_i32, %c0_i32_0 : i32, i32
  }
  func.func @transform_8(%arg0: i32) -> (i32, i32) {
    %c0_i32 = arith.constant 0 : i32
    %c0_i32_0 = arith.constant 0 : i32
    %c0_i32_1 = arith.constant 0 : i32
    return %c0_i32, %c0_i32_0 : i32, i32
  }
  func.func @transform_9(%arg0: i32) -> (i32, i32) {
    %c0_i32 = arith.constant 0 : i32
    %c0_i32_0 = arith.constant 0 : i32
    %c0_i32_1 = arith.constant 0 : i32
    return %c0_i32, %c0_i32_0 : i32, i32
  }
  func.func @transform_10(%arg0: i32) -> (i32, i32) {
    %c0_i32 = arith.constant 0 : i32
    %c0_i32_0 = arith.constant 0 : i32
    %c0_i32_1 = arith.constant 0 : i32
    return %c0_i32, %c0_i32_0 : i32, i32
  }
  func.func @transform_11(%arg0: i32) -> (i32, i32) {
    %c0_i32 = arith.constant 0 : i32
    %c0_i32_0 = arith.constant 0 : i32
    %c0_i32_1 = arith.constant 0 : i32
    return %c0_i32, %c0_i32_0 : i32, i32
  }
  func.func @transform_12(%arg0: i32) -> (i32, i32) {
    %c0_i32 = arith.constant 0 : i32
    %c0_i32_0 = arith.constant 0 : i32
    %c0_i32_1 = arith.constant 0 : i32
    return %c0_i32, %c0_i32_0 : i32, i32
  }
  func.func @transform_13(%arg0: i32) -> (i32, i32) {
    %c0_i32 = arith.constant 0 : i32
    %c0_i32_0 = arith.constant 0 : i32
    %c0_i32_1 = arith.constant 0 : i32
    return %c0_i32, %c0_i32_0 : i32, i32
  }
  func.func @transform_14(%arg0: i32) -> (i32, i32) {
    %c0_i32 = arith.constant 0 : i32
    %c0_i32_0 = arith.constant 0 : i32
    %c0_i32_1 = arith.constant 0 : i32
    return %c0_i32, %c0_i32_0 : i32, i32
  }
  func.func @transform_15(%arg0: i32) -> (i32, i32) {
    %c0_i32 = arith.constant 0 : i32
    %c0_i32_0 = arith.constant 0 : i32
    %c0_i32_1 = arith.constant 0 : i32
    return %c0_i32, %c0_i32_0 : i32, i32
  }
  func.func @transform_16(%arg0: i32) -> (i32, i32) {
    %c0_i32 = arith.constant 0 : i32
    %c0_i32_0 = arith.constant 0 : i32
    %c0_i32_1 = arith.constant 0 : i32
    return %c0_i32, %c0_i32_0 : i32, i32
  }
  func.func @transform_17(%arg0: i32) -> (i32, i32) {
    %c0_i32 = arith.constant 0 : i32
    %c0_i32_0 = arith.constant 0 : i32
    %c0_i32_1 = arith.constant 0 : i32
    return %c0_i32, %c0_i32_0 : i32, i32
  }
  func.func @transform_18(%arg0: i32) -> (i32, i32) {
    %c0_i32 = arith.constant 0 : i32
    %c0_i32_0 = arith.constant 0 : i32
    %c0_i32_1 = arith.constant 0 : i32
    return %c0_i32, %c0_i32_0 : i32, i32
  }
  func.func @transform_19(%arg0: i32) -> (i32, i32) {
    %c0_i32 = arith.constant 0 : i32
    %c0_i32_0 = arith.constant 0 : i32
    %c0_i32_1 = arith.constant 0 : i32
    return %c0_i32, %c0_i32_0 : i32, i32
  }
  func.func @transform_20(%arg0: i32) -> (i32, i32) {
    %c0_i32 = arith.constant 0 : i32
    %c0_i32_0 = arith.constant 0 : i32
    %c0_i32_1 = arith.constant 0 : i32
    return %c0_i32, %c0_i32_0 : i32, i32
  }
  func.func @transform_21(%arg0: i32) -> (i32, i32) {
    %c0_i32 = arith.constant 0 : i32
    %c0_i32_0 = arith.constant 0 : i32
    %c0_i32_1 = arith.constant 0 : i32
    return %c0_i32, %c0_i32_0 : i32, i32
  }
  func.func @transform_22(%arg0: i32) -> (i32, i32) {
    %c0_i32 = arith.constant 0 : i32
    %c0_i32_0 = arith.constant 0 : i32
    %c0_i32_1 = arith.constant 0 : i32
    return %c0_i32, %c0_i32_0 : i32, i32
  }
  func.func @transform_23(%arg0: i32) -> (i32, i32) {
    %c0_i32 = arith.constant 0 : i32
    %c0_i32_0 = arith.constant 0 : i32
    %c0_i32_1 = arith.constant 0 : i32
    return %c0_i32, %c0_i32_0 : i32, i32
  }
  func.func @transform_24(%arg0: i32) -> (i32, i32) {
    %c0_i32 = arith.constant 0 : i32
    %c0_i32_0 = arith.constant 0 : i32
    %c0_i32_1 = arith.constant 0 : i32
    return %c0_i32, %c0_i32_0 : i32, i32
  }
  func.func @transform_25(%arg0: i32) -> (i32, i32) {
    %c0_i32 = arith.constant 0 : i32
    %c0_i32_0 = arith.constant 0 : i32
    %c0_i32_1 = arith.constant 0 : i32
    return %c0_i32, %c0_i32_0 : i32, i32
  }
}

</mosaic_0001>

<llo_original>
// kernel: tpu_custom_call.1
$region0: #{tpu_custom_call.1}
  #allocation0 [shape = 'u32[]', space=smem, size = 0x4, offset = 0x4, fixed_abs, tag = 'smem constant byte address 0x4 - core index']
  #allocation1 [shape = 'u32[144,128]{1,0:T(1,128)}', space=vmem, size = 0x12000, scoped, tag = 'internal scratch']
  %s0 = inlined_call_operand.vmem [shape: f32[8,3,256], index: 0, kind: input, shape index: {}]
  %s1 = inlined_call_operand.vmem [shape: f32[8,3,256], index: 1, kind: input, shape index: {}]
  %s2 = inlined_call_operand.vmem [shape: f32[3,32], index: 2, kind: input, shape index: {}]
  %s3 = inlined_call_operand.vmem [shape: f32[1,32], index: 3, kind: input, shape index: {}]
  %s4 = inlined_call_operand.vmem [shape: f32[32,64], index: 4, kind: input, shape index: {}]
  %s5 = inlined_call_operand.vmem [shape: f32[1,64], index: 5, kind: input, shape index: {}]
  %s6 = inlined_call_operand.vmem [shape: f32[1,64], index: 6, kind: input, shape index: {}]
  %s7 = inlined_call_operand.vmem [shape: f32[1,64], index: 7, kind: input, shape index: {}]
  %s8 = inlined_call_operand.vmem [shape: f32[64,8], index: 8, kind: input, shape index: {}]
  %s9 = inlined_call_operand.vmem [shape: f32[1,8], index: 9, kind: input, shape index: {}]
  %s10 = inlined_call_operand.vmem [shape: f32[8,64], index: 10, kind: input, shape index: {}]
  %s11 = inlined_call_operand.vmem [shape: f32[1,64], index: 11, kind: input, shape index: {}]
  %s12 = inlined_call_operand.vmem [shape: f32[1,64], index: 12, kind: input, shape index: {}]
  %s13 = inlined_call_operand.vmem [shape: f32[1,64], index: 13, kind: input, shape index: {}]
  %s14 = inlined_call_operand.vmem [shape: f32[64,8], index: 14, kind: input, shape index: {}]
  %s15 = inlined_call_operand.vmem [shape: f32[1,8], index: 15, kind: input, shape index: {}]
  %s16 = inlined_call_operand.vmem [shape: f32[3,32], index: 16, kind: input, shape index: {}]
  %s17 = inlined_call_operand.vmem [shape: f32[1,32], index: 17, kind: input, shape index: {}]
  %s18 = inlined_call_operand.vmem [shape: f32[32,64], index: 18, kind: input, shape index: {}]
  %s19 = inlined_call_operand.vmem [shape: f32[1,64], index: 19, kind: input, shape index: {}]
  %s20 = inlined_call_operand.vmem [shape: f32[1,64], index: 20, kind: input, shape index: {}]
  %s21 = inlined_call_operand.vmem [shape: f32[1,64], index: 21, kind: input, shape index: {}]
  %s22 = inlined_call_operand.vmem [shape: f32[64,8], index: 22, kind: input, shape index: {}]
  %s23 = inlined_call_operand.vmem [shape: f32[1,8], index: 23, kind: input, shape index: {}]
  %s24 = inlined_call_operand.hbm [shape: bf16[8,8], index: 24, kind: output, shape index: {0}]
  %s25 = inlined_call_operand.hbm [shape: bf16[8,8], index: 25, kind: output, shape index: {1}]
  %26 = xla_tuple %s24, %s25
  %s27 = sld [smem:[#allocation0]]
  $region114: #{tpu_custom_call.1} parent=0
    _
  %s29 = ssub.s32 1, %s27
  %s30 = scalar_select 0, %s29, %s27
  $region1: #{tpu_custom_call.1} parent=0
    #allocation2 [shape = 'u8[2048]{0}', space=vmem, size = 0x800, scoped, tag = 'output window, operand 0, single buffered']
    #allocation3 [shape = 's32[1]{0}', space=sflag, size = 0x4, scoped, tag = 'scoped memory for tpu_custom_call.1']
    #allocation4 [shape = 'u8[2048]{0}', space=vmem, size = 0x800, scoped, tag = 'output window, operand 1, single buffered']
    #allocation5 [shape = 's32[1]{0}', space=sflag, size = 0x4, scoped, tag = 'scoped memory for tpu_custom_call.1']
    %31 = vsyncpa [#allocation3], 0
    %32 = vsyncpa [#allocation5], 0
    // Predicated region
    $region2: #{tpu_custom_call.1} parent=1 // pred_check
      _
    $region3: #{tpu_custom_call.1} parent=1 // pred_check_branch
      %34 = sbr.rel (0) target = $region5
    $region4: #{tpu_custom_call.1} parent=1 // pred_region
      _
    $region5: #{tpu_custom_call.1} parent=1 // pred_fallthru
      _
    // Predicated region
    $region6: #{tpu_custom_call.1} parent=1 // pred_check
      _
    $region7: #{tpu_custom_call.1} parent=1 // pred_check_branch
      %36 = sbr.rel (0) target = $region9
    $region8: #{tpu_custom_call.1} parent=1 // pred_region
      _
    $region9: #{tpu_custom_call.1} parent=1 // pred_fallthru
      _
    // Predicated region
    $region10: #{tpu_custom_call.1} parent=1 // pred_check
      _
    $region11: #{tpu_custom_call.1} parent=1 // pred_check_branch
      %38 = sbr.rel (0) target = $region13
    $region12: #{tpu_custom_call.1} parent=1 // pred_region
      _
    $region13: #{tpu_custom_call.1} parent=1 // pred_fallthru
      _
    // Predicated region
    $region14: #{tpu_custom_call.1} parent=1 // pred_check
      _
    $region15: #{tpu_custom_call.1} parent=1 // pred_check_branch
      %40 = sbr.rel (0) target = $region17
    $region16: #{tpu_custom_call.1} parent=1 // pred_region
      _
    $region17: #{tpu_custom_call.1} parent=1 // pred_fallthru
      _
    // Predicated region
    $region18: #{tpu_custom_call.1} parent=1 // pred_check
      _
    $region19: #{tpu_custom_call.1} parent=1 // pred_check_branch
      %42 = sbr.rel (0) target = $region21
    $region20: #{tpu_custom_call.1} parent=1 // pred_region
      _
    $region21: #{tpu_custom_call.1} parent=1 // pred_fallthru
      _
    // Predicated region
    $region22: #{tpu_custom_call.1} parent=1 // pred_check
      _
    $region23: #{tpu_custom_call.1} parent=1 // pred_check_branch
      %44 = sbr.rel (0) target = $region25
    $region24: #{tpu_custom_call.1} parent=1 // pred_region
      _
    $region25: #{tpu_custom_call.1} parent=1 // pred_fallthru
      _
    // Predicated region
    $region26: #{tpu_custom_call.1} parent=1 // pred_check
      _
    $region27: #{tpu_custom_call.1} parent=1 // pred_check_branch
      %46 = sbr.rel (0) target = $region29
    $region28: #{tpu_custom_call.1} parent=1 // pred_region
      _
    $region29: #{tpu_custom_call.1} parent=1 // pred_fallthru
      _
    // Predicated region
    $region30: #{tpu_custom_call.1} parent=1 // pred_check
      _
    $region31: #{tpu_custom_call.1} parent=1 // pred_check_branch
      %48 = sbr.rel (0) target = $region33
    $region32: #{tpu_custom_call.1} parent=1 // pred_region
      _
    $region33: #{tpu_custom_call.1} parent=1 // pred_fallthru
      _
    // Predicated region
    $region34: #{tpu_custom_call.1} parent=1 // pred_check
      _
    $region35: #{tpu_custom_call.1} parent=1 // pred_check_branch
      %50 = sbr.rel (0) target = $region37
    $region36: #{tpu_custom_call.1} parent=1 // pred_region
      _
    $region37: #{tpu_custom_call.1} parent=1 // pred_fallthru
      _
    // Predicated region
    $region38: #{tpu_custom_call.1} parent=1 // pred_check
      _
    $region39: #{tpu_custom_call.1} parent=1 // pred_check_branch
      %52 = sbr.rel (0) target = $region41
    $region40: #{tpu_custom_call.1} parent=1 // pred_region
      _
    $region41: #{tpu_custom_call.1} parent=1 // pred_fallthru
      _
    // Predicated region
    $region42: #{tpu_custom_call.1} parent=1 // pred_check
      _
    $region43: #{tpu_custom_call.1} parent=1 // pred_check_branch
      %54 = sbr.rel (0) target = $region45
    $region44: #{tpu_custom_call.1} parent=1 // pred_region
      _
    $region45: #{tpu_custom_call.1} parent=1 // pred_fallthru
      _
    // Predicated region
    $region46: #{tpu_custom_call.1} parent=1 // pred_check
      _
    $region47: #{tpu_custom_call.1} parent=1 // pred_check_branch
      %56 = sbr.rel (0) target = $region49
    $region48: #{tpu_custom_call.1} parent=1 // pred_region
      _
    $region49: #{tpu_custom_call.1} parent=1 // pred_fallthru
      _
    // Predicated region
    $region50: #{tpu_custom_call.1} parent=1 // pred_check
      _
    $region51: #{tpu_custom_call.1} parent=1 // pred_check_branch
      %58 = sbr.rel (0) target = $region53
    $region52: #{tpu_custom_call.1} parent=1 // pred_region
      _
    $region53: #{tpu_custom_call.1} parent=1 // pred_fallthru
      _
    // Predicated region
    $region54: #{tpu_custom_call.1} parent=1 // pred_check
      _
    $region55: #{tpu_custom_call.1} parent=1 // pred_check_branch
      %60 = sbr.rel (0) target = $region57
    $region56: #{tpu_custom_call.1} parent=1 // pred_region
      _
    $region57: #{tpu_custom_call.1} parent=1 // pred_fallthru
      _
    // Predicated region
    $region58: #{tpu_custom_call.1} parent=1 // pred_check
      _
    $region59: #{tpu_custom_call.1} parent=1 // pred_check_branch
      %62 = sbr.rel (0) target = $region61
    $region60: #{tpu_custom_call.1} parent=1 // pred_region
      _
    $region61: #{tpu_custom_call.1} parent=1 // pred_fallthru
      _
    // Predicated region
    $region62: #{tpu_custom_call.1} parent=1 // pred_check
      _
    $region63: #{tpu_custom_call.1} parent=1 // pred_check_branch
      %64 = sbr.rel (0) target = $region65
    $region64: #{tpu_custom_call.1} parent=1 // pred_region
      _
    $region65: #{tpu_custom_call.1} parent=1 // pred_fallthru
      _
    // Predicated region
    $region66: #{tpu_custom_call.1} parent=1 // pred_check
      _
    $region67: #{tpu_custom_call.1} parent=1 // pred_check_branch
      %66 = sbr.rel (0) target = $region69
    $region68: #{tpu_custom_call.1} parent=1 // pred_region
      _
    $region69: #{tpu_custom_call.1} parent=1 // pred_fallthru
      _
    // Predicated region
    $region70: #{tpu_custom_call.1} parent=1 // pred_check
      _
    $region71: #{tpu_custom_call.1} parent=1 // pred_check_branch
      %68 = sbr.rel (0) target = $region73
    $region72: #{tpu_custom_call.1} parent=1 // pred_region
      _
    $region73: #{tpu_custom_call.1} parent=1 // pred_fallthru
      _
    // Predicated region
    $region74: #{tpu_custom_call.1} parent=1 // pred_check
      _
    $region75: #{tpu_custom_call.1} parent=1 // pred_check_branch
      %70 = sbr.rel (0) target = $region77
    $region76: #{tpu_custom_call.1} parent=1 // pred_region
      _
    $region77: #{tpu_custom_call.1} parent=1 // pred_fallthru
      _
    // Predicated region
    $region78: #{tpu_custom_call.1} parent=1 // pred_check
      _
    $region79: #{tpu_custom_call.1} parent=1 // pred_check_branch
      %72 = sbr.rel (0) target = $region81
    $region80: #{tpu_custom_call.1} parent=1 // pred_region
      _
    $region81: #{tpu_custom_call.1} parent=1 // pred_fallthru
      _
    // Predicated region
    $region82: #{tpu_custom_call.1} parent=1 // pred_check
      _
    $region83: #{tpu_custom_call.1} parent=1 // pred_check_branch
      %74 = sbr.rel (0) target = $region85
    $region84: #{tpu_custom_call.1} parent=1 // pred_region
      _
    $region85: #{tpu_custom_call.1} parent=1 // pred_fallthru
      _
    // Predicated region
    $region86: #{tpu_custom_call.1} parent=1 // pred_check
      _
    $region87: #{tpu_custom_call.1} parent=1 // pred_check_branch
      %76 = sbr.rel (0) target = $region89
    $region88: #{tpu_custom_call.1} parent=1 // pred_region
      _
    $region89: #{tpu_custom_call.1} parent=1 // pred_fallthru
      _
    // Predicated region
    $region90: #{tpu_custom_call.1} parent=1 // pred_check
      _
    $region91: #{tpu_custom_call.1} parent=1 // pred_check_branch
      %78 = sbr.rel (0) target = $region93
    $region92: #{tpu_custom_call.1} parent=1 // pred_region
      _
    $region93: #{tpu_custom_call.1} parent=1 // pred_fallthru
      _
    // Predicated region
    $region94: #{tpu_custom_call.1} parent=1 // pred_check
      _
    $region95: #{tpu_custom_call.1} parent=1 // pred_check_branch
      %80 = sbr.rel (0) target = $region97
    $region96: #{tpu_custom_call.1} parent=1 // pred_region
      _
    $region97: #{tpu_custom_call.1} parent=1 // pred_fallthru
      _
    %v81 = vld [vmem:[%s0] sm:$0x77]
    %v82 = vld [vmem:[%s0 + $0x8] sm:$0x77]
    %v83 = vld [vmem:[%s0 + $0x10] sm:$0x77]
    %v84 = vld [vmem:[%s0 + $0x18] sm:$0x77]
    %v85 = vld [vmem:[%s0 + $0x20] sm:$0x77]
    %v86 = vld [vmem:[%s0 + $0x28] sm:$0x77]
    %v87 = vld [vmem:[%s0 + $0x30] sm:$0x77]
    %v88 = vld [vmem:[%s0 + $0x38] sm:$0x77]
    %v97 = vcombine.high %v81, %v81
    %v98 = vcombine.high %v82, %v82
    %v99 = vcombine.high %v83, %v83
    %v100 = vcombine.high %v84, %v84
    %v101 = vcombine.high %v85, %v85
    %v102 = vcombine.high %v86, %v86
    %v103 = vcombine.high %v87, %v87
    %v104 = vcombine.high %v88, %v88
    %vm113 = vcmask 1042432
    %v114 = vsel %vm113, %v81, 0.0
    %v115 = vsel %vm113, %v97, 0.0
    %v116 = vadd.f32 %v114, %v115
    %117 = vadd.xlane.f32.xlu0 %v116
    %v118 = vpop.xlane.xlu0 %117
    %v119 = vsel %vm113, %v82, 0.0
    %v120 = vsel %vm113, %v98, 0.0
    %v121 = vadd.f32 %v119, %v120
    %122 = vadd.xlane.f32.xlu0 %v121
    %v123 = vpop.xlane.xlu0 %122
    %v124 = vsel %vm113, %v83, 0.0
    %v125 = vsel %vm113, %v99, 0.0
    %v126 = vadd.f32 %v124, %v125
    %127 = vadd.xlane.f32.xlu0 %v126
    %v128 = vpop.xlane.xlu0 %127
    %v129 = vsel %vm113, %v84, 0.0
    %v130 = vsel %vm113, %v100, 0.0
    %v131 = vadd.f32 %v129, %v130
    %132 = vadd.xlane.f32.xlu0 %v131
    %v133 = vpop.xlane.xlu0 %132
    %v134 = vsel %vm113, %v85, 0.0
    %v135 = vsel %vm113, %v101, 0.0
    %v136 = vadd.f32 %v134, %v135
    %137 = vadd.xlane.f32.xlu0 %v136
    %v138 = vpop.xlane.xlu0 %137
    %v139 = vsel %vm113, %v86, 0.0
    %v140 = vsel %vm113, %v102, 0.0
    %v141 = vadd.f32 %v139, %v140
    %142 = vadd.xlane.f32.xlu0 %v141
    %v143 = vpop.xlane.xlu0 %142
    %v144 = vsel %vm113, %v87, 0.0
    %v145 = vsel %vm113, %v103, 0.0
    %v146 = vadd.f32 %v144, %v145
    %147 = vadd.xlane.f32.xlu0 %v146
    %v148 = vpop.xlane.xlu0 %147
    %v149 = vsel %vm113, %v88, 0.0
    %v150 = vsel %vm113, %v104, 0.0
    %v151 = vadd.f32 %v149, %v150
    %152 = vadd.xlane.f32.xlu0 %v151
    %v153 = vpop.xlane.xlu0 %152
    %v154 = vld [vmem:[%s2] sm:$0x7]
    %v155 = vld [vmem:[%s3] sm:$0x1]
    %v157 = vlaneseq
    %v158 = vshrl.u32 %v157, 7
    %v159 = vsub.s32 0, %v158
    %v160 = vrot.slane %v155, %v159
    %v170 = vlaneseq
    %v171 = vand.u32 %v170, 127
    %v172 = vlaneseq
    %v173 = vshrl.u32 %v172, 7
    %v174 = vsub.s32 %v171, %v173
    %v175 = vrot.slane %v118, %v174
    %v176 = vlaneseq
    %v177 = vshrl.u32 %v176, 7
    %v178 = vsub.s32 %v171, %v177
    %v179 = vrot.slane %v123, %v178
    %v180 = vlaneseq
    %v181 = vshrl.u32 %v180, 7
    %v182 = vsub.s32 %v171, %v181
    %v183 = vrot.slane %v128, %v182
    %v184 = vlaneseq
    %v185 = vshrl.u32 %v184, 7
    %v186 = vsub.s32 %v171, %v185
    %v187 = vrot.slane %v133, %v186
    %v188 = vlaneseq
    %v189 = vshrl.u32 %v188, 7
    %v190 = vsub.s32 %v171, %v189
    %v191 = vrot.slane %v138, %v190
    %v192 = vlaneseq
    %v193 = vshrl.u32 %v192, 7
    %v194 = vsub.s32 %v171, %v193
    %v195 = vrot.slane %v143, %v194
    %v196 = vlaneseq
    %v197 = vshrl.u32 %v196, 7
    %v198 = vsub.s32 %v171, %v197
    %v199 = vrot.slane %v148, %v198
    %v200 = vlaneseq
    %v201 = vshrl.u32 %v200, 7
    %v202 = vsub.s32 %v171, %v201
    %v203 = vrot.slane %v153, %v202
    %vm204 = vcmask 1041409
    %v205 = vsel %vm204, %v179, %v175
    %vm206 = vcmask 1042434
    %v207 = vsel %vm206, %v183, %v205
    %vm208 = vcmask 1043459
    %v209 = vsel %vm208, %v187, %v207
    %vm210 = vcmask 1044484
    %v211 = vsel %vm210, %v191, %v209
    %vm212 = vcmask 1045509
    %v213 = vsel %vm212, %v195, %v211
    %vm214 = vcmask 1046534
    %v215 = vsel %vm214, %v199, %v213
    %vm216 = vcmask 1047559
    %v217 = vsel %vm216, %v203, %v215
    %vm218 = vcmask 23552
    %v219 = vsel %vm218, %v217, 0
    %v222 = vsel %vm113, %v154, 0
    %224 = vmatprep.subr.mxu0 0.0
    %225 = vmatpush1.msra.mxu0 0.0
    %226 = vmatprep.subr.mxu0 0.0
    %227 = vmatpush1.msra.mxu0 0.0
    %228 = vmatprep.subr.mxu0 0.0
    %229 = vmatpush1.msra.mxu0 0.0
    %230 = vmatprep.subr.mxu0 0.0
    %231 = vmatpush1.msra.mxu0 0.0
    %232 = vmatprep.subr.mxu0 0.0
    %233 = vmatpush1.msra.mxu0 0.0
    %234 = vmatprep.subr.mxu0 0.0
    %235 = vmatpush1.msra.mxu0 0.0
    %236 = vmatprep.subr.mxu0 0.0
    %237 = vmatpush1.msra.mxu0 0.0
    %238 = vmatprep.subr.mxu0 0.0
    %239 = vmatpush1.msra.mxu0 0.0
    %240 = vmatprep.subr.mxu0 0.0
    %241 = vmatpush1.msra.mxu0 0.0
    %242 = vmatprep.subr.mxu0 0.0
    %243 = vmatpush1.msra.mxu0 0.0
    %244 = vmatprep.subr.mxu0 0.0
    %245 = vmatpush1.msra.mxu0 0.0
    %246 = vmatprep.subr.mxu0 0.0
    %247 = vmatpush1.msra.mxu0 0.0
    %248 = vmatprep.subr.mxu0 0.0
    %249 = vmatpush1.msra.mxu0 0.0
    %250 = vmatprep.subr.mxu0 0.0
    %251 = vmatpush1.msra.mxu0 0.0
    %252 = vmatprep.subr.mxu0 0.0
    %253 = vmatpush1.msra.mxu0 0.0
    %254 = vmatprep.subr.mxu0 0.0
    %255 = vmatpush1.msra.mxu0 %v222
    %256 = vmatprep.subr.mxu0 0.0
    %257 = vmatpush2.msra.mxu0 0.0
    %258 = vmatprep.subr.mxu0 0.0
    %259 = vmatpush2.msra.mxu0 0.0
    %260 = vmatprep.subr.mxu0 0.0
    %261 = vmatpush2.msra.mxu0 0.0
    %262 = vmatprep.subr.mxu0 0.0
    %263 = vmatpush2.msra.mxu0 0.0
    %264 = vmatprep.subr.mxu0 0.0
    %265 = vmatpush2.msra.mxu0 0.0
    %266 = vmatprep.subr.mxu0 0.0
    %267 = vmatpush2.msra.mxu0 0.0
    %268 = vmatprep.subr.mxu0 0.0
    %269 = vmatpush2.msra.mxu0 0.0
    %270 = vmatprep.subr.mxu0 0.0
    %271 = vmatpush2.msra.mxu0 0.0
    %272 = vmatprep.subr.mxu0 0.0
    %273 = vmatpush2.msra.mxu0 0.0
    %274 = vmatprep.subr.mxu0 0.0
    %275 = vmatpush2.msra.mxu0 0.0
    %276 = vmatprep.subr.mxu0 0.0
    %277 = vmatpush2.msra.mxu0 0.0
    %278 = vmatprep.subr.mxu0 0.0
    %279 = vmatpush2.msra.mxu0 0.0
    %280 = vmatprep.subr.mxu0 0.0
    %281 = vmatpush2.msra.mxu0 0.0
    %282 = vmatprep.subr.mxu0 0.0
    %283 = vmatpush2.msra.mxu0 0.0
    %284 = vmatprep.subr.mxu0 0.0
    %285 = vmatpush2.msra.mxu0 0.0
    %286 = vmatprep.subr.mxu0 0.0
    %287 = vmatpush2.msra.mxu0 0.0
    %288 = vmatprep.mubr.f32.mxu0 0.0
    %289 = vmatmul.mubr.f32.gmra.mxu0 %v219
    %v290 = vpop.f32.mrf.mxu0
    %v291 = vadd.f32 %v160, %v290
    %v292 = vpop.f32.mrf.mxu0
    %293 = vdwg.mxu0
    %v294 = vld [vmem:[%s4] sm:$0xff]
    %v295 = vld [vmem:[%s4 + $0x8] sm:$0xff]
    %v296 = vld [vmem:[%s4 + $0x10] sm:$0xff]
    %v297 = vld [vmem:[%s4 + $0x18] sm:$0xff]
    %v298 = vld [vmem:[%s5] sm:$0x1]
    %v299 = vld [vmem:[%s6] sm:$0x1]
    %v300 = vld [vmem:[%s7] sm:$0x1]
    %v301 = vld [vmem:[%s8] sm:$0xff]
    %v302 = vld [vmem:[%s8 + $0x8] sm:$0xff]
    %v303 = vld [vmem:[%s8 + $0x10] sm:$0xff]
    %v304 = vld [vmem:[%s8 + $0x18] sm:$0xff]
    %v305 = vld [vmem:[%s8 + $0x20] sm:$0xff]
    %v306 = vld [vmem:[%s8 + $0x28] sm:$0xff]
    %v307 = vld [vmem:[%s8 + $0x30] sm:$0xff]
    %v308 = vld [vmem:[%s8 + $0x38] sm:$0xff]
    %v309 = vld [vmem:[%s9] sm:$0x1]
    %v311 = vlaneseq
    %v312 = vshrl.u32 %v311, 7
    %v313 = vsub.s32 0, %v312
    %v314 = vrot.slane %v298, %v313
    %vm316 = vcmask 261120
    %v318 = vsel %vm316, %v291, 0
    %320 = vmatprep.subr.mxu0 0.0
    %321 = vmatpush1.msra.mxu0 0.0
    %322 = vmatprep.subr.mxu0 0.0
    %323 = vmatpush1.msra.mxu0 0.0
    %324 = vmatprep.subr.mxu0 0.0
    %325 = vmatpush1.msra.mxu0 0.0
    %326 = vmatprep.subr.mxu0 0.0
    %327 = vmatpush1.msra.mxu0 0.0
    %328 = vmatprep.subr.mxu0 0.0
    %329 = vmatpush1.msra.mxu0 0.0
    %330 = vmatprep.subr.mxu0 0.0
    %331 = vmatpush1.msra.mxu0 0.0
    %332 = vmatprep.subr.mxu0 0.0
    %333 = vmatpush1.msra.mxu0 0.0
    %334 = vmatprep.subr.mxu0 0.0
    %335 = vmatpush1.msra.mxu0 0.0
    %336 = vmatprep.subr.mxu0 0.0
    %337 = vmatpush1.msra.mxu0 0.0
    %338 = vmatprep.subr.mxu0 0.0
    %339 = vmatpush1.msra.mxu0 0.0
    %340 = vmatprep.subr.mxu0 0.0
    %341 = vmatpush1.msra.mxu0 0.0
    %342 = vmatprep.subr.mxu0 0.0
    %343 = vmatpush1.msra.mxu0 0.0
    %344 = vmatprep.subr.mxu0 0.0
    %345 = vmatpush1.msra.mxu0 %v297
    %346 = vmatprep.subr.mxu0 0.0
    %347 = vmatpush1.msra.mxu0 %v296
    %348 = vmatprep.subr.mxu0 0.0
    %349 = vmatpush1.msra.mxu0 %v295
    %350 = vmatprep.subr.mxu0 0.0
    %351 = vmatpush1.msra.mxu0 %v294
    %352 = vmatprep.subr.mxu0 0.0
    %353 = vmatpush2.msra.mxu0 0.0
    %354 = vmatprep.subr.mxu0 0.0
    %355 = vmatpush2.msra.mxu0 0.0
    %356 = vmatprep.subr.mxu0 0.0
    %357 = vmatpush2.msra.mxu0 0.0
    %358 = vmatprep.subr.mxu0 0.0
    %359 = vmatpush2.msra.mxu0 0.0
    %360 = vmatprep.subr.mxu0 0.0
    %361 = vmatpush2.msra.mxu0 0.0
    %362 = vmatprep.subr.mxu0 0.0
    %363 = vmatpush2.msra.mxu0 0.0
    %364 = vmatprep.subr.mxu0 0.0
    %365 = vmatpush2.msra.mxu0 0.0
    %366 = vmatprep.subr.mxu0 0.0
    %367 = vmatpush2.msra.mxu0 0.0
    %368 = vmatprep.subr.mxu0 0.0
    %369 = vmatpush2.msra.mxu0 0.0
    %370 = vmatprep.subr.mxu0 0.0
    %371 = vmatpush2.msra.mxu0 0.0
    %372 = vmatprep.subr.mxu0 0.0
    %373 = vmatpush2.msra.mxu0 0.0
    %374 = vmatprep.subr.mxu0 0.0
    %375 = vmatpush2.msra.mxu0 0.0
    %376 = vmatprep.subr.mxu0 0.0
    %377 = vmatpush2.msra.mxu0 0.0
    %378 = vmatprep.subr.mxu0 0.0
    %379 = vmatpush2.msra.mxu0 0.0
    %380 = vmatprep.subr.mxu0 0.0
    %381 = vmatpush2.msra.mxu0 0.0
    %382 = vmatprep.subr.mxu0 0.0
    %383 = vmatpush2.msra.mxu0 0.0
    %384 = vmatprep.mubr.f32.mxu0 0.0
    %385 = vmatmul.mubr.f32.gmra.mxu0 %v318
    %v386 = vpop.f32.mrf.mxu0
    %v387 = vadd.f32 %v314, %v386
    %v388 = vpop.f32.mrf.mxu0
    %389 = vdwg.mxu0
    %vm390 = vcmask 523264
    %v391 = vsel %vm390, %v387, 0.0
    %v392 = vrot.slane %v391, 4
    %v393 = vadd.f32 %v391, %v392
    %v394 = vrot.slane %v393, 2
    %v395 = vadd.f32 %v393, %v394
    %v396 = vrot.slane %v395, 1
    %v397 = vadd.f32 %v395, %v396
    %v398 = vrcp.pop 8.0
    %v399 = vmul.f32 %v397, %v398
    %v400 = vmul.f32 %v387, %v387
    %v401 = vsel %vm390, %v400, 0.0
    %v402 = vrot.slane %v401, 4
    %v403 = vadd.f32 %v401, %v402
    %v404 = vrot.slane %v403, 2
    %v405 = vadd.f32 %v403, %v404
    %v406 = vrot.slane %v405, 1
    %v407 = vadd.f32 %v405, %v406
    %v408 = vmul.f32 %v407, %v398
    %v409 = vmul.f32 %v399, %v399
    %v410 = vsub.f32 %v408, %v409
    %v411 = vmax.f32 %v410, 0.0
    %v412 = vsub.f32 %v387, %v399
    %v413 = vadd.f32 %v411, 1e-05
    %v414 = vrsqrt.pop %v413
    %v415 = vmul.f32 %v412, %v414
    %v417 = vlaneseq
    %v418 = vshrl.u32 %v417, 7
    %v419 = vsub.s32 0, %v418
    %v420 = vrot.slane %v299, %v419
    %v422 = vmul.f32 %v415, %v420
    %v424 = vlaneseq
    %v425 = vshrl.u32 %v424, 7
    %v426 = vsub.s32 0, %v425
    %v427 = vrot.slane %v300, %v426
    %v429 = vadd.f32 %v422, %v427
    %v430 = vmax.f32 %v429, 0.0
    %v432 = vlaneseq
    %v433 = vshrl.u32 %v432, 7
    %v434 = vsub.s32 0, %v433
    %v435 = vrot.slane %v309, %v434
    %v438 = vsel %vm390, %v430, 0
    %440 = vmatprep.subr.mxu0 0.0
    %441 = vmatpush1.msra.mxu0 0.0
    %442 = vmatprep.subr.mxu0 0.0
    %443 = vmatpush1.msra.mxu0 0.0
    %444 = vmatprep.subr.mxu0 0.0
    %445 = vmatpush1.msra.mxu0 0.0
    %446 = vmatprep.subr.mxu0 0.0
    %447 = vmatpush1.msra.mxu0 0.0
    %448 = vmatprep.subr.mxu0 0.0
    %449 = vmatpush1.msra.mxu0 0.0
    %450 = vmatprep.subr.mxu0 0.0
    %451 = vmatpush1.msra.mxu0 0.0
    %452 = vmatprep.subr.mxu0 0.0
    %453 = vmatpush1.msra.mxu0 0.0
    %454 = vmatprep.subr.mxu0 0.0
    %455 = vmatpush1.msra.mxu0 0.0
    %456 = vmatprep.subr.mxu0 0.0
    %457 = vmatpush1.msra.mxu0 %v308
    %458 = vmatprep.subr.mxu0 0.0
    %459 = vmatpush1.msra.mxu0 %v307
    %460 = vmatprep.subr.mxu0 0.0
    %461 = vmatpush1.msra.mxu0 %v306
    %462 = vmatprep.subr.mxu0 0.0
    %463 = vmatpush1.msra.mxu0 %v305
    %464 = vmatprep.subr.mxu0 0.0
    %465 = vmatpush1.msra.mxu0 %v304
    %466 = vmatprep.subr.mxu0 0.0
    %467 = vmatpush1.msra.mxu0 %v303
    %468 = vmatprep.subr.mxu0 0.0
    %469 = vmatpush1.msra.mxu0 %v302
    %470 = vmatprep.subr.mxu0 0.0
    %471 = vmatpush1.msra.mxu0 %v301
    %472 = vmatprep.subr.mxu0 0.0
    %473 = vmatpush2.msra.mxu0 0.0
    %474 = vmatprep.subr.mxu0 0.0
    %475 = vmatpush2.msra.mxu0 0.0
    %476 = vmatprep.subr.mxu0 0.0
    %477 = vmatpush2.msra.mxu0 0.0
    %478 = vmatprep.subr.mxu0 0.0
    %479 = vmatpush2.msra.mxu0 0.0
    %480 = vmatprep.subr.mxu0 0.0
    %481 = vmatpush2.msra.mxu0 0.0
    %482 = vmatprep.subr.mxu0 0.0
    %483 = vmatpush2.msra.mxu0 0.0
    %484 = vmatprep.subr.mxu0 0.0
    %485 = vmatpush2.msra.mxu0 0.0
    %486 = vmatprep.subr.mxu0 0.0
    %487 = vmatpush2.msra.mxu0 0.0
    %488 = vmatprep.subr.mxu0 0.0
    %489 = vmatpush2.msra.mxu0 0.0
    %490 = vmatprep.subr.mxu0 0.0
    %491 = vmatpush2.msra.mxu0 0.0
    %492 = vmatprep.subr.mxu0 0.0
    %493 = vmatpush2.msra.mxu0 0.0
    %494 = vmatprep.subr.mxu0 0.0
    %495 = vmatpush2.msra.mxu0 0.0
    %496 = vmatprep.subr.mxu0 0.0
    %497 = vmatpush2.msra.mxu0 0.0
    %498 = vmatprep.subr.mxu0 0.0
    %499 = vmatpush2.msra.mxu0 0.0
    %500 = vmatprep.subr.mxu0 0.0
    %501 = vmatpush2.msra.mxu0 0.0
    %502 = vmatprep.subr.mxu0 0.0
    %503 = vmatpush2.msra.mxu0 0.0
    %504 = vmatprep.mubr.f32.mxu0 0.0
    %505 = vmatmul.mubr.f32.gmra.mxu0 %v438
    %v506 = vpop.f32.mrf.mxu0
    %v507 = vadd.f32 %v435, %v506
    %v508 = vpop.f32.mrf.mxu0
    %509 = vdwg.mxu0
    %v510 = vld [vmem:[%s10] sm:$0xff]
    %v511 = vld [vmem:[%s11] sm:$0x1]
    %v512 = vld [vmem:[%s12] sm:$0x1]
    %v513 = vld [vmem:[%s13] sm:$0x1]
    %v514 = vld [vmem:[%s14] sm:$0xff]
    %v515 = vld [vmem:[%s14 + $0x8] sm:$0xff]
    %v516 = vld [vmem:[%s14 + $0x10] sm:$0xff]
    %v517 = vld [vmem:[%s14 + $0x18] sm:$0xff]
    %v518 = vld [vmem:[%s14 + $0x20] sm:$0xff]
    %v519 = vld [vmem:[%s14 + $0x28] sm:$0xff]
    %v520 = vld [vmem:[%s14 + $0x30] sm:$0xff]
    %v521 = vld [vmem:[%s14 + $0x38] sm:$0xff]
    %v522 = vld [vmem:[%s15] sm:$0x1]
    %v524 = vlaneseq
    %v525 = vshrl.u32 %v524, 7
    %v526 = vsub.s32 0, %v525
    %v527 = vrot.slane %v511, %v526
    %vm529 = vcmask 64512
    %v531 = vsel %vm529, %v507, 0
    %533 = vmatprep.subr.mxu0 0.0
    %534 = vmatpush1.msra.mxu0 0.0
    %535 = vmatprep.subr.mxu0 0.0
    %536 = vmatpush1.msra.mxu0 0.0
    %537 = vmatprep.subr.mxu0 0.0
    %538 = vmatpush1.msra.mxu0 0.0
    %539 = vmatprep.subr.mxu0 0.0
    %540 = vmatpush1.msra.mxu0 0.0
    %541 = vmatprep.subr.mxu0 0.0
    %542 = vmatpush1.msra.mxu0 0.0
    %543 = vmatprep.subr.mxu0 0.0
    %544 = vmatpush1.msra.mxu0 0.0
    %545 = vmatprep.subr.mxu0 0.0
    %546 = vmatpush1.msra.mxu0 0.0
    %547 = vmatprep.subr.mxu0 0.0
    %548 = vmatpush1.msra.mxu0 0.0
    %549 = vmatprep.subr.mxu0 0.0
    %550 = vmatpush1.msra.mxu0 0.0
    %551 = vmatprep.subr.mxu0 0.0
    %552 = vmatpush1.msra.mxu0 0.0
    %553 = vmatprep.subr.mxu0 0.0
    %554 = vmatpush1.msra.mxu0 0.0
    %555 = vmatprep.subr.mxu0 0.0
    %556 = vmatpush1.msra.mxu0 0.0
    %557 = vmatprep.subr.mxu0 0.0
    %558 = vmatpush1.msra.mxu0 0.0
    %559 = vmatprep.subr.mxu0 0.0
    %560 = vmatpush1.msra.mxu0 0.0
    %561 = vmatprep.subr.mxu0 0.0
    %562 = vmatpush1.msra.mxu0 0.0
    %563 = vmatprep.subr.mxu0 0.0
    %564 = vmatpush1.msra.mxu0 %v510
    %565 = vmatprep.subr.mxu0 0.0
    %566 = vmatpush2.msra.mxu0 0.0
    %567 = vmatprep.subr.mxu0 0.0
    %568 = vmatpush2.msra.mxu0 0.0
    %569 = vmatprep.subr.mxu0 0.0
    %570 = vmatpush2.msra.mxu0 0.0
    %571 = vmatprep.subr.mxu0 0.0
    %572 = vmatpush2.msra.mxu0 0.0
    %573 = vmatprep.subr.mxu0 0.0
    %574 = vmatpush2.msra.mxu0 0.0
    %575 = vmatprep.subr.mxu0 0.0
    %576 = vmatpush2.msra.mxu0 0.0
    %577 = vmatprep.subr.mxu0 0.0
    %578 = vmatpush2.msra.mxu0 0.0
    %579 = vmatprep.subr.mxu0 0.0
    %580 = vmatpush2.msra.mxu0 0.0
    %581 = vmatprep.subr.mxu0 0.0
    %582 = vmatpush2.msra.mxu0 0.0
    %583 = vmatprep.subr.mxu0 0.0
    %584 = vmatpush2.msra.mxu0 0.0
    %585 = vmatprep.subr.mxu0 0.0
    %586 = vmatpush2.msra.mxu0 0.0
    %587 = vmatprep.subr.mxu0 0.0
    %588 = vmatpush2.msra.mxu0 0.0
    %589 = vmatprep.subr.mxu0 0.0
    %590 = vmatpush2.msra.mxu0 0.0
    %591 = vmatprep.subr.mxu0 0.0
    %592 = vmatpush2.msra.mxu0 0.0
    %593 = vmatprep.subr.mxu0 0.0
    %594 = vmatpush2.msra.mxu0 0.0
    %595 = vmatprep.subr.mxu0 0.0
    %596 = vmatpush2.msra.mxu0 0.0
    %597 = vmatprep.mubr.f32.mxu0 0.0
    %598 = vmatmul.mubr.f32.gmra.mxu0 %v531
    %v599 = vpop.f32.mrf.mxu0
    %v600 = vadd.f32 %v527, %v599
    %v601 = vpop.f32.mrf.mxu0
    %602 = vdwg.mxu0
    %v603 = vsel %vm390, %v600, 0.0
    %v604 = vrot.slane %v603, 4
    %v605 = vadd.f32 %v603, %v604
    %v606 = vrot.slane %v605, 2
    %v607 = vadd.f32 %v605, %v606
    %v608 = vrot.slane %v607, 1
    %v609 = vadd.f32 %v607, %v608
    %v610 = vmul.f32 %v609, %v398
    %v611 = vmul.f32 %v600, %v600
    %v612 = vsel %vm390, %v611, 0.0
    %v613 = vrot.slane %v612, 4
    %v614 = vadd.f32 %v612, %v613
    %v615 = vrot.slane %v614, 2
    %v616 = vadd.f32 %v614, %v615
    %v617 = vrot.slane %v616, 1
    %v618 = vadd.f32 %v616, %v617
    %v619 = vmul.f32 %v618, %v398
    %v620 = vmul.f32 %v610, %v610
    %v621 = vsub.f32 %v619, %v620
    %v622 = vmax.f32 %v621, 0.0
    %v623 = vsub.f32 %v600, %v610
    %v624 = vadd.f32 %v622, 1e-05
    %v625 = vrsqrt.pop %v624
    %v626 = vmul.f32 %v623, %v625
    %v628 = vlaneseq
    %v629 = vshrl.u32 %v628, 7
    %v630 = vsub.s32 0, %v629
    %v631 = vrot.slane %v512, %v630
    %v633 = vmul.f32 %v626, %v631
    %v635 = vlaneseq
    %v636 = vshrl.u32 %v635, 7
    %v637 = vsub.s32 0, %v636
    %v638 = vrot.slane %v513, %v637
    %v640 = vadd.f32 %v633, %v638
    %v641 = vmax.f32 %v640, 0.0
    %v643 = vlaneseq
    %v644 = vshrl.u32 %v643, 7
    %v645 = vsub.s32 0, %v644
    %v646 = vrot.slane %v522, %v645
    %v649 = vsel %vm390, %v641, 0
    %651 = vmatprep.subr.mxu0 0.0
    %652 = vmatpush1.msra.mxu0 0.0
    %653 = vmatprep.subr.mxu0 0.0
    %654 = vmatpush1.msra.mxu0 0.0
    %655 = vmatprep.subr.mxu0 0.0
    %656 = vmatpush1.msra.mxu0 0.0
    %657 = vmatprep.subr.mxu0 0.0
    %658 = vmatpush1.msra.mxu0 0.0
    %659 = vmatprep.subr.mxu0 0.0
    %660 = vmatpush1.msra.mxu0 0.0
    %661 = vmatprep.subr.mxu0 0.0
    %662 = vmatpush1.msra.mxu0 0.0
    %663 = vmatprep.subr.mxu0 0.0
    %664 = vmatpush1.msra.mxu0 0.0
    %665 = vmatprep.subr.mxu0 0.0
    %666 = vmatpush1.msra.mxu0 0.0
    %667 = vmatprep.subr.mxu0 0.0
    %668 = vmatpush1.msra.mxu0 %v521
    %669 = vmatprep.subr.mxu0 0.0
    %670 = vmatpush1.msra.mxu0 %v520
    %671 = vmatprep.subr.mxu0 0.0
    %672 = vmatpush1.msra.mxu0 %v519
    %673 = vmatprep.subr.mxu0 0.0
    %674 = vmatpush1.msra.mxu0 %v518
    %675 = vmatprep.subr.mxu0 0.0
    %676 = vmatpush1.msra.mxu0 %v517
    %677 = vmatprep.subr.mxu0 0.0
    %678 = vmatpush1.msra.mxu0 %v516
    %679 = vmatprep.subr.mxu0 0.0
    %680 = vmatpush1.msra.mxu0 %v515
    %681 = vmatprep.subr.mxu0 0.0
    %682 = vmatpush1.msra.mxu0 %v514
    %683 = vmatprep.subr.mxu0 0.0
    %684 = vmatpush2.msra.mxu0 0.0
    %685 = vmatprep.subr.mxu0 0.0
    %686 = vmatpush2.msra.mxu0 0.0
    %687 = vmatprep.subr.mxu0 0.0
    %688 = vmatpush2.msra.mxu0 0.0
    %689 = vmatprep.subr.mxu0 0.0
    %690 = vmatpush2.msra.mxu0 0.0
    %691 = vmatprep.subr.mxu0 0.0
    %692 = vmatpush2.msra.mxu0 0.0
    %693 = vmatprep.subr.mxu0 0.0
    %694 = vmatpush2.msra.mxu0 0.0
    %695 = vmatprep.subr.mxu0 0.0
    %696 = vmatpush2.msra.mxu0 0.0
    %697 = vmatprep.subr.mxu0 0.0
    %698 = vmatpush2.msra.mxu0 0.0
    %699 = vmatprep.subr.mxu0 0.0
    %700 = vmatpush2.msra.mxu0 0.0
    %701 = vmatprep.subr.mxu0 0.0
    %702 = vmatpush2.msra.mxu0 0.0
    %703 = vmatprep.subr.mxu0 0.0
    %704 = vmatpush2.msra.mxu0 0.0
    %705 = vmatprep.subr.mxu0 0.0
    %706 = vmatpush2.msra.mxu0 0.0
    %707 = vmatprep.subr.mxu0 0.0
    %708 = vmatpush2.msra.mxu0 0.0
    %709 = vmatprep.subr.mxu0 0.0
    %710 = vmatpush2.msra.mxu0 0.0
    %711 = vmatprep.subr.mxu0 0.0
    %712 = vmatpush2.msra.mxu0 0.0
    %713 = vmatprep.subr.mxu0 0.0
    %714 = vmatpush2.msra.mxu0 0.0
    %715 = vmatprep.mubr.f32.mxu0 0.0
    %716 = vmatmul.mubr.f32.gmra.mxu0 %v649
    %v717 = vpop.f32.mrf.mxu0
    %v718 = vadd.f32 %v646, %v717
    %v719 = vpop.f32.mrf.mxu0
    %720 = vdwg.mxu0
    %v721 = vmul.f32 %v718, %v718
    %v722 = vsel %vm529, %v721, 0.0
    %723 = vadd.xlane.f32.xlu0 %v722
    %v724 = vpop.xlane.xlu0 %723
    %v725 = vmax.f32 %v724, 1e-24
    %v726 = vrsqrt.pop %v725
    %v727 = vmul.f32 %v718, %v726
    %v728 = vpack.c.bf16 %v727, %v727
    %vm729 = vcmask 60416
    %730 = vst.msk [vmem:[#allocation2] sm:$0xf] %vm729, %v728
    %v731 = vld [vmem:[%s1] sm:$0x77]
    %v732 = vld [vmem:[%s1 + $0x8] sm:$0x77]
    %v733 = vld [vmem:[%s1 + $0x10] sm:$0x77]
    %v734 = vld [vmem:[%s1 + $0x18] sm:$0x77]
    %v735 = vld [vmem:[%s1 + $0x20] sm:$0x77]
    %v736 = vld [vmem:[%s1 + $0x28] sm:$0x77]
    %v737 = vld [vmem:[%s1 + $0x30] sm:$0x77]
    %v738 = vld [vmem:[%s1 + $0x38] sm:$0x77]
    %v747 = vcombine.high %v731, %v731
    %v748 = vcombine.high %v732, %v732
    %v749 = vcombine.high %v733, %v733
    %v750 = vcombine.high %v734, %v734
    %v751 = vcombine.high %v735, %v735
    %v752 = vcombine.high %v736, %v736
    %v753 = vcombine.high %v737, %v737
    %v754 = vcombine.high %v738, %v738
    %v763 = vsel %vm113, %v731, 0.0
    %v764 = vsel %vm113, %v747, 0.0
    %v765 = vadd.f32 %v763, %v764
    %766 = vadd.xlane.f32.xlu0 %v765
    %v767 = vpop.xlane.xlu0 %766
    %v768 = vsel %vm113, %v732, 0.0
    %v769 = vsel %vm113, %v748, 0.0
    %v770 = vadd.f32 %v768, %v769
    %771 = vadd.xlane.f32.xlu0 %v770
    %v772 = vpop.xlane.xlu0 %771
    %v773 = vsel %vm113, %v733, 0.0
    %v774 = vsel %vm113, %v749, 0.0
    %v775 = vadd.f32 %v773, %v774
    %776 = vadd.xlane.f32.xlu0 %v775
    %v777 = vpop.xlane.xlu0 %776
    %v778 = vsel %vm113, %v734, 0.0
    %v779 = vsel %vm113, %v750, 0.0
    %v780 = vadd.f32 %v778, %v779
    %781 = vadd.xlane.f32.xlu0 %v780
    %v782 = vpop.xlane.xlu0 %781
    %v783 = vsel %vm113, %v735, 0.0
    %v784 = vsel %vm113, %v751, 0.0
    %v785 = vadd.f32 %v783, %v784
    %786 = vadd.xlane.f32.xlu0 %v785
    %v787 = vpop.xlane.xlu0 %786
    %v788 = vsel %vm113, %v736, 0.0
    %v789 = vsel %vm113, %v752, 0.0
    %v790 = vadd.f32 %v788, %v789
    %791 = vadd.xlane.f32.xlu0 %v790
    %v792 = vpop.xlane.xlu0 %791
    %v793 = vsel %vm113, %v737, 0.0
    %v794 = vsel %vm113, %v753, 0.0
    %v795 = vadd.f32 %v793, %v794
    %796 = vadd.xlane.f32.xlu0 %v795
    %v797 = vpop.xlane.xlu0 %796
    %v798 = vsel %vm113, %v738, 0.0
    %v799 = vsel %vm113, %v754, 0.0
    %v800 = vadd.f32 %v798, %v799
    %801 = vadd.xlane.f32.xlu0 %v800
    %v802 = vpop.xlane.xlu0 %801
    %v803 = vld [vmem:[%s16] sm:$0x7]
    %v804 = vld [vmem:[%s17] sm:$0x1]
    %v806 = vlaneseq
    %v807 = vshrl.u32 %v806, 7
    %v808 = vsub.s32 0, %v807
    %v809 = vrot.slane %v804, %v808
    %v819 = vlaneseq
    %v820 = vshrl.u32 %v819, 7
    %v821 = vsub.s32 %v171, %v820
    %v822 = vrot.slane %v767, %v821
    %v823 = vlaneseq
    %v824 = vshrl.u32 %v823, 7
    %v825 = vsub.s32 %v171, %v824
    %v826 = vrot.slane %v772, %v825
    %v827 = vlaneseq
    %v828 = vshrl.u32 %v827, 7
    %v829 = vsub.s32 %v171, %v828
    %v830 = vrot.slane %v777, %v829
    %v831 = vlaneseq
    %v832 = vshrl.u32 %v831, 7
    %v833 = vsub.s32 %v171, %v832
    %v834 = vrot.slane %v782, %v833
    %v835 = vlaneseq
    %v836 = vshrl.u32 %v835, 7
    %v837 = vsub.s32 %v171, %v836
    %v838 = vrot.slane %v787, %v837
    %v839 = vlaneseq
    %v840 = vshrl.u32 %v839, 7
    %v841 = vsub.s32 %v171, %v840
    %v842 = vrot.slane %v792, %v841
    %v843 = vlaneseq
    %v844 = vshrl.u32 %v843, 7
    %v845 = vsub.s32 %v171, %v844
    %v846 = vrot.slane %v797, %v845
    %v847 = vlaneseq
    %v848 = vshrl.u32 %v847, 7
    %v849 = vsub.s32 %v171, %v848
    %v850 = vrot.slane %v802, %v849
    %v851 = vsel %vm204, %v826, %v822
    %v852 = vsel %vm206, %v830, %v851
    %v853 = vsel %vm208, %v834, %v852
    %v854 = vsel %vm210, %v838, %v853
    %v855 = vsel %vm212, %v842, %v854
    %v856 = vsel %vm214, %v846, %v855
    %v857 = vsel %vm216, %v850, %v856
    %v858 = vsel %vm218, %v857, 0
    %v861 = vsel %vm113, %v803, 0
    %863 = vmatprep.subr.mxu0 0.0
    %864 = vmatpush1.msra.mxu0 0.0
    %865 = vmatprep.subr.mxu0 0.0
    %866 = vmatpush1.msra.mxu0 0.0
    %867 = vmatprep.subr.mxu0 0.0
    %868 = vmatpush1.msra.mxu0 0.0
    %869 = vmatprep.subr.mxu0 0.0
    %870 = vmatpush1.msra.mxu0 0.0
    %871 = vmatprep.subr.mxu0 0.0
    %872 = vmatpush1.msra.mxu0 0.0
    %873 = vmatprep.subr.mxu0 0.0
    %874 = vmatpush1.msra.mxu0 0.0
    %875 = vmatprep.subr.mxu0 0.0
    %876 = vmatpush1.msra.mxu0 0.0
    %877 = vmatprep.subr.mxu0 0.0
    %878 = vmatpush1.msra.mxu0 0.0
    %879 = vmatprep.subr.mxu0 0.0
    %880 = vmatpush1.msra.mxu0 0.0
    %881 = vmatprep.subr.mxu0 0.0
    %882 = vmatpush1.msra.mxu0 0.0
    %883 = vmatprep.subr.mxu0 0.0
    %884 = vmatpush1.msra.mxu0 0.0
    %885 = vmatprep.subr.mxu0 0.0
    %886 = vmatpush1.msra.mxu0 0.0
    %887 = vmatprep.subr.mxu0 0.0
    %888 = vmatpush1.msra.mxu0 0.0
    %889 = vmatprep.subr.mxu0 0.0
    %890 = vmatpush1.msra.mxu0 0.0
    %891 = vmatprep.subr.mxu0 0.0
    %892 = vmatpush1.msra.mxu0 0.0
    %893 = vmatprep.subr.mxu0 0.0
    %894 = vmatpush1.msra.mxu0 %v861
    %895 = vmatprep.subr.mxu0 0.0
    %896 = vmatpush2.msra.mxu0 0.0
    %897 = vmatprep.subr.mxu0 0.0
    %898 = vmatpush2.msra.mxu0 0.0
    %899 = vmatprep.subr.mxu0 0.0
    %900 = vmatpush2.msra.mxu0 0.0
    %901 = vmatprep.subr.mxu0 0.0
    %902 = vmatpush2.msra.mxu0 0.0
    %903 = vmatprep.subr.mxu0 0.0
    %904 = vmatpush2.msra.mxu0 0.0
    %905 = vmatprep.subr.mxu0 0.0
    %906 = vmatpush2.msra.mxu0 0.0
    %907 = vmatprep.subr.mxu0 0.0
    %908 = vmatpush2.msra.mxu0 0.0
    %909 = vmatprep.subr.mxu0 0.0
    %910 = vmatpush2.msra.mxu0 0.0
    %911 = vmatprep.subr.mxu0 0.0
    %912 = vmatpush2.msra.mxu0 0.0
    %913 = vmatprep.subr.mxu0 0.0
    %914 = vmatpush2.msra.mxu0 0.0
    %915 = vmatprep.subr.mxu0 0.0
    %916 = vmatpush2.msra.mxu0 0.0
    %917 = vmatprep.subr.mxu0 0.0
    %918 = vmatpush2.msra.mxu0 0.0
    %919 = vmatprep.subr.mxu0 0.0
    %920 = vmatpush2.msra.mxu0 0.0
    %921 = vmatprep.subr.mxu0 0.0
    %922 = vmatpush2.msra.mxu0 0.0
    %923 = vmatprep.subr.mxu0 0.0
    %924 = vmatpush2.msra.mxu0 0.0
    %925 = vmatprep.subr.mxu0 0.0
    %926 = vmatpush2.msra.mxu0 0.0
    %927 = vmatprep.mubr.f32.mxu0 0.0
    %928 = vmatmul.mubr.f32.gmra.mxu0 %v858
    %v929 = vpop.f32.mrf.mxu0
    %v930 = vadd.f32 %v809, %v929
    %v931 = vpop.f32.mrf.mxu0
    %932 = vdwg.mxu0
    %v933 = vld [vmem:[%s18] sm:$0xff]
    %v934 = vld [vmem:[%s18 + $0x8] sm:$0xff]
    %v935 = vld [vmem:[%s18 + $0x10] sm:$0xff]
    %v936 = vld [vmem:[%s18 + $0x18] sm:$0xff]
    %v937 = vld [vmem:[%s19] sm:$0x1]
    %v938 = vld [vmem:[%s20] sm:$0x1]
    %v939 = vld [vmem:[%s21] sm:$0x1]
    %v940 = vld [vmem:[%s22] sm:$0xff]
    %v941 = vld [vmem:[%s22 + $0x8] sm:$0xff]
    %v942 = vld [vmem:[%s22 + $0x10] sm:$0xff]
    %v943 = vld [vmem:[%s22 + $0x18] sm:$0xff]
    %v944 = vld [vmem:[%s22 + $0x20] sm:$0xff]
    %v945 = vld [vmem:[%s22 + $0x28] sm:$0xff]
    %v946 = vld [vmem:[%s22 + $0x30] sm:$0xff]
    %v947 = vld [vmem:[%s22 + $0x38] sm:$0xff]
    %v948 = vld [vmem:[%s23] sm:$0x1]
    %v950 = vlaneseq
    %v951 = vshrl.u32 %v950, 7
    %v952 = vsub.s32 0, %v951
    %v953 = vrot.slane %v937, %v952
    %v956 = vsel %vm316, %v930, 0
    %958 = vmatprep.subr.mxu0 0.0
    %959 = vmatpush1.msra.mxu0 0.0
    %960 = vmatprep.subr.mxu0 0.0
    %961 = vmatpush1.msra.mxu0 0.0
    %962 = vmatprep.subr.mxu0 0.0
    %963 = vmatpush1.msra.mxu0 0.0
    %964 = vmatprep.subr.mxu0 0.0
    %965 = vmatpush1.msra.mxu0 0.0
    %966 = vmatprep.subr.mxu0 0.0
    %967 = vmatpush1.msra.mxu0 0.0
    %968 = vmatprep.subr.mxu0 0.0
    %969 = vmatpush1.msra.mxu0 0.0
    %970 = vmatprep.subr.mxu0 0.0
    %971 = vmatpush1.msra.mxu0 0.0
    %972 = vmatprep.subr.mxu0 0.0
    %973 = vmatpush1.msra.mxu0 0.0
    %974 = vmatprep.subr.mxu0 0.0
    %975 = vmatpush1.msra.mxu0 0.0
    %976 = vmatprep.subr.mxu0 0.0
    %977 = vmatpush1.msra.mxu0 0.0
    %978 = vmatprep.subr.mxu0 0.0
    %979 = vmatpush1.msra.mxu0 0.0
    %980 = vmatprep.subr.mxu0 0.0
    %981 = vmatpush1.msra.mxu0 0.0
    %982 = vmatprep.subr.mxu0 0.0
    %983 = vmatpush1.msra.mxu0 %v936
    %984 = vmatprep.subr.mxu0 0.0
    %985 = vmatpush1.msra.mxu0 %v935
    %986 = vmatprep.subr.mxu0 0.0
    %987 = vmatpush1.msra.mxu0 %v934
    %988 = vmatprep.subr.mxu0 0.0
    %989 = vmatpush1.msra.mxu0 %v933
    %990 = vmatprep.subr.mxu0 0.0
    %991 = vmatpush2.msra.mxu0 0.0
    %992 = vmatprep.subr.mxu0 0.0
    %993 = vmatpush2.msra.mxu0 0.0
    %994 = vmatprep.subr.mxu0 0.0
    %995 = vmatpush2.msra.mxu0 0.0
    %996 = vmatprep.subr.mxu0 0.0
    %997 = vmatpush2.msra.mxu0 0.0
    %998 = vmatprep.subr.mxu0 0.0
    %999 = vmatpush2.msra.mxu0 0.0
    %1000 = vmatprep.subr.mxu0 0.0
    %1001 = vmatpush2.msra.mxu0 0.0
    %1002 = vmatprep.subr.mxu0 0.0
    %1003 = vmatpush2.msra.mxu0 0.0
    %1004 = vmatprep.subr.mxu0 0.0
    %1005 = vmatpush2.msra.mxu0 0.0
    %1006 = vmatprep.subr.mxu0 0.0
    %1007 = vmatpush2.msra.mxu0 0.0
    %1008 = vmatprep.subr.mxu0 0.0
    %1009 = vmatpush2.msra.mxu0 0.0
    %1010 = vmatprep.subr.mxu0 0.0
    %1011 = vmatpush2.msra.mxu0 0.0
    %1012 = vmatprep.subr.mxu0 0.0
    %1013 = vmatpush2.msra.mxu0 0.0
    %1014 = vmatprep.subr.mxu0 0.0
    %1015 = vmatpush2.msra.mxu0 0.0
    %1016 = vmatprep.subr.mxu0 0.0
    %1017 = vmatpush2.msra.mxu0 0.0
    %1018 = vmatprep.subr.mxu0 0.0
    %1019 = vmatpush2.msra.mxu0 0.0
    %1020 = vmatprep.subr.mxu0 0.0
    %1021 = vmatpush2.msra.mxu0 0.0
    %1022 = vmatprep.mubr.f32.mxu0 0.0
    %1023 = vmatmul.mubr.f32.gmra.mxu0 %v956
    %v1024 = vpop.f32.mrf.mxu0
    %v1025 = vadd.f32 %v953, %v1024
    %v1026 = vpop.f32.mrf.mxu0
    %1027 = vdwg.mxu0
    %v1028 = vsel %vm390, %v1025, 0.0
    %v1029 = vrot.slane %v1028, 4
    %v1030 = vadd.f32 %v1028, %v1029
    %v1031 = vrot.slane %v1030, 2
    %v1032 = vadd.f32 %v1030, %v1031
    %v1033 = vrot.slane %v1032, 1
    %v1034 = vadd.f32 %v1032, %v1033
    %v1035 = vmul.f32 %v1034, %v398
    %v1036 = vmul.f32 %v1025, %v1025
    %v1037 = vsel %vm390, %v1036, 0.0
    %v1038 = vrot.slane %v1037, 4
    %v1039 = vadd.f32 %v1037, %v1038
    %v1040 = vrot.slane %v1039, 2
    %v1041 = vadd.f32 %v1039, %v1040
    %v1042 = vrot.slane %v1041, 1
    %v1043 = vadd.f32 %v1041, %v1042
    %v1044 = vmul.f32 %v1043, %v398
    %v1045 = vmul.f32 %v1035, %v1035
    %v1046 = vsub.f32 %v1044, %v1045
    %v1047 = vmax.f32 %v1046, 0.0
    %v1048 = vsub.f32 %v1025, %v1035
    %v1049 = vadd.f32 %v1047, 1e-05
    %v1050 = vrsqrt.pop %v1049
    %v1051 = vmul.f32 %v1048, %v1050
    %v1053 = vlaneseq
    %v1054 = vshrl.u32 %v1053, 7
    %v1055 = vsub.s32 0, %v1054
    %v1056 = vrot.slane %v938, %v1055
    %v1058 = vmul.f32 %v1051, %v1056
    %v1060 = vlaneseq
    %v1061 = vshrl.u32 %v1060, 7
    %v1062 = vsub.s32 0, %v1061
    %v1063 = vrot.slane %v939, %v1062
    %v1065 = vadd.f32 %v1058, %v1063
    %v1066 = vmax.f32 %v1065, 0.0
    %v1068 = vlaneseq
    %v1069 = vshrl.u32 %v1068, 7
    %v1070 = vsub.s32 0, %v1069
    %v1071 = vrot.slane %v948, %v1070
    %v1074 = vsel %vm390, %v1066, 0
    %1076 = vmatprep.subr.mxu0 0.0
    %1077 = vmatpush1.msra.mxu0 0.0
    %1078 = vmatprep.subr.mxu0 0.0
    %1079 = vmatpush1.msra.mxu0 0.0
    %1080 = vmatprep.subr.mxu0 0.0
    %1081 = vmatpush1.msra.mxu0 0.0
    %1082 = vmatprep.subr.mxu0 0.0
    %1083 = vmatpush1.msra.mxu0 0.0
    %1084 = vmatprep.subr.mxu0 0.0
    %1085 = vmatpush1.msra.mxu0 0.0
    %1086 = vmatprep.subr.mxu0 0.0
    %1087 = vmatpush1.msra.mxu0 0.0
    %1088 = vmatprep.subr.mxu0 0.0
    %1089 = vmatpush1.msra.mxu0 0.0
    %1090 = vmatprep.subr.mxu0 0.0
    %1091 = vmatpush1.msra.mxu0 0.0
    %1092 = vmatprep.subr.mxu0 0.0
    %1093 = vmatpush1.msra.mxu0 %v947
    %1094 = vmatprep.subr.mxu0 0.0
    %1095 = vmatpush1.msra.mxu0 %v946
    %1096 = vmatprep.subr.mxu0 0.0
    %1097 = vmatpush1.msra.mxu0 %v945
    %1098 = vmatprep.subr.mxu0 0.0
    %1099 = vmatpush1.msra.mxu0 %v944
    %1100 = vmatprep.subr.mxu0 0.0
    %1101 = vmatpush1.msra.mxu0 %v943
    %1102 = vmatprep.subr.mxu0 0.0
    %1103 = vmatpush1.msra.mxu0 %v942
    %1104 = vmatprep.subr.mxu0 0.0
    %1105 = vmatpush1.msra.mxu0 %v941
    %1106 = vmatprep.subr.mxu0 0.0
    %1107 = vmatpush1.msra.mxu0 %v940
    %1108 = vmatprep.subr.mxu0 0.0
    %1109 = vmatpush2.msra.mxu0 0.0
    %1110 = vmatprep.subr.mxu0 0.0
    %1111 = vmatpush2.msra.mxu0 0.0
    %1112 = vmatprep.subr.mxu0 0.0
    %1113 = vmatpush2.msra.mxu0 0.0
    %1114 = vmatprep.subr.mxu0 0.0
    %1115 = vmatpush2.msra.mxu0 0.0
    %1116 = vmatprep.subr.mxu0 0.0
    %1117 = vmatpush2.msra.mxu0 0.0
    %1118 = vmatprep.subr.mxu0 0.0
    %1119 = vmatpush2.msra.mxu0 0.0
    %1120 = vmatprep.subr.mxu0 0.0
    %1121 = vmatpush2.msra.mxu0 0.0
    %1122 = vmatprep.subr.mxu0 0.0
    %1123 = vmatpush2.msra.mxu0 0.0
    %1124 = vmatprep.subr.mxu0 0.0
    %1125 = vmatpush2.msra.mxu0 0.0
    %1126 = vmatprep.subr.mxu0 0.0
    %1127 = vmatpush2.msra.mxu0 0.0
    %1128 = vmatprep.subr.mxu0 0.0
    %1129 = vmatpush2.msra.mxu0 0.0
    %1130 = vmatprep.subr.mxu0 0.0
    %1131 = vmatpush2.msra.mxu0 0.0
    %1132 = vmatprep.subr.mxu0 0.0
    %1133 = vmatpush2.msra.mxu0 0.0
    %1134 = vmatprep.subr.mxu0 0.0
    %1135 = vmatpush2.msra.mxu0 0.0
    %1136 = vmatprep.subr.mxu0 0.0
    %1137 = vmatpush2.msra.mxu0 0.0
    %1138 = vmatprep.subr.mxu0 0.0
    %1139 = vmatpush2.msra.mxu0 0.0
    %1140 = vmatprep.mubr.f32.mxu0 0.0
    %1141 = vmatmul.mubr.f32.gmra.mxu0 %v1074
    %v1142 = vpop.f32.mrf.mxu0
    %v1143 = vadd.f32 %v1071, %v1142
    %v1144 = vpop.f32.mrf.mxu0
    %1145 = vdwg.mxu0
    %v1146 = vmul.f32 %v1143, %v1143
    %v1147 = vsel %vm529, %v1146, 0.0
    %1148 = vadd.xlane.f32.xlu0 %v1147
    %v1149 = vpop.xlane.xlu0 %1148
    %v1150 = vmax.f32 %v1149, 1e-24
    %v1151 = vrsqrt.pop %v1150
    %v1152 = vmul.f32 %v1143, %v1151
    %v1153 = vpack.c.bf16 %v1152, %v1152
    %1154 = vst.msk [vmem:[#allocation4] sm:$0xf] %vm729, %v1153
    // Predicated region
    $region98: #{tpu_custom_call.1} parent=1 // pred_check
      _
    $region99: #{tpu_custom_call.1} parent=1 // pred_check_branch
      %1156 = sbr.rel (0) target = $region101
    $region100: #{tpu_custom_call.1} parent=1 // pred_region
      %s1158 = ssub.s32 64, 64
      %1159 = vsyncadd [#allocation3], %s1158
      %s1161 = sshll.u32 [#allocation2], 4
      %s1162 = int_to_ptr.vmem [resolvable:$true] %s1161
      %1164 = dma.vmem_to_hbm [thread:$0]  %s1162, 64, %s24, [#allocation3]
    $region101: #{tpu_custom_call.1} parent=1 // pred_fallthru
      _
    // Predicated region
    $region102: #{tpu_custom_call.1} parent=1 // pred_check
      _
    $region103: #{tpu_custom_call.1} parent=1 // pred_check_branch
      %1166 = sbr.rel (0) target = $region105
    $region104: #{tpu_custom_call.1} parent=1 // pred_region
      %s1168 = ssub.s32 64, 64
      %1169 = vsyncadd [#allocation5], %s1168
      %s1171 = sshll.u32 [#allocation4], 4
      %s1172 = int_to_ptr.vmem [resolvable:$true] %s1171
      %1174 = dma.vmem_to_hbm [thread:$0]  %s1172, 64, %s25, [#allocation5]
    $region105: #{tpu_custom_call.1} parent=1 // pred_fallthru
      _
    // Predicated region
    $region106: #{tpu_custom_call.1} parent=1 // pred_check
      _
    $region107: #{tpu_custom_call.1} parent=1 // pred_check_branch
      %1176 = sbr.rel (0) target = $region109
    $region108: #{tpu_custom_call.1} parent=1 // pred_region
      %1177 = dma.done [#allocation3], 64
    $region109: #{tpu_custom_call.1} parent=1 // pred_fallthru
      _
    // Predicated region
    $region110: #{tpu_custom_call.1} parent=1 // pred_check
      _
    $region111: #{tpu_custom_call.1} parent=1 // pred_check_branch
      %1179 = sbr.rel (0) target = $region113
    $region112: #{tpu_custom_call.1} parent=1 // pred_region
      %1180 = dma.done [#allocation5], 64
    $region113: #{tpu_custom_call.1} parent=1 // pred_fallthru
      _
    %1181 = vsyncpa [#allocation3], 1
    %1182 = vsyncpa [#allocation5], 1

</llo_original>
